<compile_context>
chip_gen: v7x
topology: tpu7x:2x2x1
jax: 0.10.0
libtpu: 0.0.40
codegen_flags: <defaults>
</compile_context>

<pallas_src>
import functools

import numpy as np
import jax
import jax.numpy as jnp
from jax.experimental import pallas as pl
from jax.experimental.pallas import tpu as pltpu

_K1D = np.array([1.0, 4.0, 6.0, 4.0, 1.0], dtype=np.float64)  # binomial taps
_MAX_LEVELS = 5
_OUT_LANES = 128  # lane-dense per-grid-step output row


# ---------------------------------------------------------------------------
# Constant band matrices (built once in numpy; encode pad + filter + resample)
# ---------------------------------------------------------------------------
def _reflect_idx(p, n):
    """PyTorch/np 'reflect' padding index map for p in [-2, n+1]."""
    if p < 0:
        return -p
    if p >= n:
        return 2 * (n - 1) - p
    return p


def _down_matrix(n):
    """(n/2, n): reflect-pad(2) + 5-tap gauss (k/16 per axis) + stride-2 decimate."""
    m = np.zeros((n // 2, n), dtype=np.float64)
    for i in range(n // 2):
        for a in range(5):
            m[i, _reflect_idx(2 * i + a - 2, n)] += _K1D[a] / 16.0
    return m.astype(np.float32)


def _up_matrix(n):
    """(n, n/2): zero-interleave + reflect-pad(2) + 5-tap (k/8 per axis) upsample."""
    half = n // 2
    m = np.zeros((n, half), dtype=np.float64)
    for i in range(n):
        for a in range(5):
            src = _reflect_idx(i + a - 2, n)
            if src % 2 == 0:  # odd positions of the interleaved image are zeros
                m[i, src // 2] += _K1D[a] / 8.0
    return m.astype(np.float32)


def _block_diag(m, p):
    """Repeat matrix m p times on the block diagonal (per-plane column pass)."""
    r, c = m.shape
    out = np.zeros((p * r, p * c), dtype=np.float32)
    for i in range(p):
        out[i * r:(i + 1) * r, i * c:(i + 1) * c] = m
    return out


def _round_up(x, m):
    return -(-x // m) * m


def _build_packed_mats(H, W, P, levels):
    """Pack all per-level band matrices into one resident f32 array.

    Returns (packed[R, C], layout) where layout[l] = 4 tuples (row_off, rows, cols)
    for (D_row, blockdiag(D_col^T), U_row, blockdiag(U_col^T)).
    """
    layout, raw = [], []
    row_off, max_cols = 0, 0
    nh, nw = H, W
    for _ in range(levels):
        dr = _down_matrix(nh)                        # (nh/2, nh)
        bdc = _block_diag(_down_matrix(nw).T, P)     # (P*nw, P*nw/2)   pre-transposed
        ur = _up_matrix(nh)                          # (nh, nh/2)
        buc = _block_diag(_up_matrix(nw).T, P)       # (P*nw/2, P*nw)   pre-transposed
        lvl = []
        for m in (dr, bdc, ur, buc):
            r, c = int(m.shape[0]), int(m.shape[1])
            lvl.append((int(row_off), r, c))
            raw.append((int(row_off), m))
            max_cols = max(max_cols, c)
            row_off += _round_up(r, 8)               # keep every slice sublane-aligned
        layout.append(tuple(lvl))
        nh //= 2
        nw //= 2

    R = max(8, row_off)
    C = _round_up(max_cols, 128)
    packed = np.zeros((R, C), dtype=np.float32)
    for off, m in raw:
        packed[off:off + m.shape[0], :m.shape[1]] = m
    return packed, tuple(layout)


# ---------------------------------------------------------------------------
# Fused Pallas kernel: full Laplacian pyramid of the DIFFERENCE image
#   cur layout: (h, P * w)  -- P planes side by side along the lane axis.
# ---------------------------------------------------------------------------
def _laploss_kernel(diff_ref, mats_ref, out_ref, *, layout):
    cur = diff_ref[0]                                             # (H, P*W) f32

    lanes = jax.lax.broadcasted_iota(jnp.int32, (1, _OUT_LANES), 1)
    acc = jnp.zeros((1, _OUT_LANES), jnp.float32)

    def _mat(meta):
        off, r, c = meta
        return mats_ref[pl.ds(off, r), pl.ds(0, c)]

    for l, (dr_m, bdc_m, ur_m, buc_m) in enumerate(layout):
        d_row = _mat(dr_m)          # (nh/2, nh)
        bd_d_colT = _mat(bdc_m)     # (P*nw, P*nw/2)
        u_row = _mat(ur_m)          # (nh, nh/2)
        bd_u_colT = _mat(buc_m)     # (P*nw/2, P*nw)

        # down = D_row @ cur @ blockdiag(D_col^T)   (gauss + reflect pad + stride-2)
        t = jnp.dot(d_row, cur, preferred_element_type=jnp.float32)       # (nh/2, P*nw)
        down = jnp.dot(t, bd_d_colT, preferred_element_type=jnp.float32)  # (nh/2, P*nw/2)
        # up = U_row @ down @ blockdiag(U_col^T)    (interleave + reflect pad + 4*gauss)
        t2 = jnp.dot(down, bd_u_colT, preferred_element_type=jnp.float32)  # (nh/2, P*nw)
        up = jnp.dot(u_row, t2, preferred_element_type=jnp.float32)        # (nh,   P*nw)

        s = jnp.sum(jnp.abs(cur - up))              # sum |lap_l(img0-img1)| over planes
        acc = acc + jnp.where(lanes == l, s, jnp.float32(0.0))
        cur = down

    out_ref[0] = acc


# ---------------------------------------------------------------------------
# Wrapper
# ---------------------------------------------------------------------------
def lap_loss(img0, img1, max_levels=_MAX_LEVELS):
    N, C, H, W = img0.shape
    NC = N * C

    # Same validity constraint as the reference (reflect pad 2 needs size >= 3,
    # stride-2 pyramid needs even sizes at every level).
    h, w = H, W
    for _ in range(max_levels):
        assert h >= 4 and w >= 4 and h % 2 == 0 and w % 2 == 0, (H, W)
        h //= 2
        w //= 2

    # Two groups when possible so both v7x TensorCores get work (free on v5e/v6e).
    G = 2 if NC % 2 == 0 else 1
    P = NC // G

    # LapLoss is linear in the image up to the |.|: build one pyramid of the diff.
    diff = (img0 - img1).astype(jnp.float32).reshape(NC, H, W)
    # (G, P, H, W) -> (G, H, P, W) -> (G, H, P*W): plane p occupies lanes [p*W, (p+1)*W).
    diff_wide = diff.reshape(G, P, H, W).transpose(0, 2, 1, 3).reshape(G, H, P * W)

    packed_np, layout = _build_packed_mats(H, W, P, max_levels)
    packed = jnp.asarray(packed_np)

    out = pl.pallas_call(
        functools.partial(_laploss_kernel, layout=layout),
        out_shape=jax.ShapeDtypeStruct((G, 1, _OUT_LANES), jnp.float32),
        grid=(G,),
        in_specs=[
            pl.BlockSpec((1, H, P * W), lambda g: (g, 0, 0)),   # diff planes of group g
            pl.BlockSpec(packed_np.shape, lambda g: (0, 0)),    # resident constants
        ],
        out_specs=pl.BlockSpec((1, 1, _OUT_LANES), lambda g: (g, 0, 0)),
        compiler_params=pltpu.CompilerParams(dimension_semantics=("parallel",)),
    )(diff_wide, packed)

    # Tiny scalar epilogue: per-level mean = (sum over planes) / (N*C*H_l*W_l).
    level_sums = jnp.sum(out[:, 0, :max_levels], axis=0)            # (levels,)
    counts = jnp.asarray([NC * (H >> l) * (W >> l) for l in range(max_levels)],
                         dtype=jnp.float32)
    # NOTE: matches the common LapLoss (RIFE-style): only the max_levels Laplacian
    # diffs are summed; no final low-pass residual term is appended.
    return jnp.sum(level_sums / counts)


def total_loss(img0, img1):
    # Total_Loss.forward: loss = sum_i loss_i(img0, img1) * weight_i
    # with self.loss = [LapLoss()], self.weight = [1.0]
    loss = jnp.float32(0.0)
    for l_fn, wgt in zip([lap_loss], [1.0]):
        loss = loss + l_fn(img0, img1) * wgt
    return loss


if __name__ == "__main__":
    key = jax.random.PRNGKey(0)
    k0, k1 = jax.random.split(key)
    # batch=2, channels=3 (LapLoss default), spatial=64 so that 5 pyramid levels
    # keep reflect-pad(2) valid at the smallest level (4x4).
    img0 = jax.random.uniform(k0, (2, 3, 64, 64), dtype=jnp.float32)
    img1 = jax.random.uniform(k1, (2, 3, 64, 64), dtype=jnp.float32)

    out = jax.jit(total_loss)(img0, img1)
    jax.block_until_ready(out)
    print("KERNEL_OK")
</pallas_src>

<mosaic_0001>
module attributes {stable_mosaic.version = 11 : i64} {
  func.func @_laploss_kernel(%arg0: i32, %arg1: memref<1x64x192xf32, #tpu.memory_space<vmem>>, %arg2: memref<768x256xf32, #tpu.memory_space<vmem>>, %arg3: memref<1x1x128xf32, #tpu.memory_space<vmem>>) attributes {dimension_semantics = [#tpu.dimension_semantics<parallel>], iteration_bounds = array<i64: 2>, scalar_prefetch = 0 : i64, scratch_operands = 0 : i64, tpu.core_type = #tpu.core_type<tc>, window_params = [{transform_indices = @transform_0, window_bounds = array<i64: 1, 64, 192>}, {pipeline_mode = #tpu.pipeline_mode<synchronous>, transform_indices = @transform_1, window_bounds = array<i64: 768, 256>}, {transform_indices = @transform_2, window_bounds = array<i64: 1, 1, 128>}]} {
    %c0 = arith.constant 0 : index
    %c0_0 = arith.constant 0 : index
    %c0_1 = arith.constant 0 : index
    %0 = vector.load %arg1[%c0, %c0_0, %c0_1] : memref<1x64x192xf32, #tpu.memory_space<vmem>>, vector<1x64x192xf32>
    %1 = vector.shape_cast %0 : vector<1x64x192xf32> to vector<64x192xf32>
    %2 = tpu.iota {dimensions = array<i32: 1>} : vector<1x128xi32>
    %cst = arith.constant 0.000000e+00 : f32
    %3 = vector.broadcast %cst : f32 to vector<1x128xf32>
    %c0_2 = arith.constant 0 : index
    %c0_3 = arith.constant 0 : index
    %4 = vector.load %arg2[%c0_2, %c0_3] : memref<768x256xf32, #tpu.memory_space<vmem>>, vector<32x64xf32>
    %c32 = arith.constant 32 : index
    %c0_4 = arith.constant 0 : index
    %5 = vector.load %arg2[%c32, %c0_4] : memref<768x256xf32, #tpu.memory_space<vmem>>, vector<192x96xf32>
    %c224 = arith.constant 224 : index
    %c0_5 = arith.constant 0 : index
    %6 = vector.load %arg2[%c224, %c0_5] : memref<768x256xf32, #tpu.memory_space<vmem>>, vector<64x32xf32>
    %c288 = arith.constant 288 : index
    %c0_6 = arith.constant 0 : index
    %7 = vector.load %arg2[%c288, %c0_6] : memref<768x256xf32, #tpu.memory_space<vmem>>, vector<96x192xf32>
    %cst_7 = arith.constant dense<0.000000e+00> : vector<32x192xf32>
    %8 = tpu.matmul %4, %1, %cst_7 {dimension_numbers = #tpu.dot_dimension_numbers<[1], [0], [0], [1], [0, 0, 1, 1], [], []>} : vector<32x64xf32>, vector<64x192xf32>, vector<32x192xf32> -> vector<32x192xf32>
    %cst_8 = arith.constant dense<0.000000e+00> : vector<32x96xf32>
    %9 = tpu.matmul %8, %5, %cst_8 {dimension_numbers = #tpu.dot_dimension_numbers<[1], [0], [0], [1], [0, 0, 1, 1], [], []>} : vector<32x192xf32>, vector<192x96xf32>, vector<32x96xf32> -> vector<32x96xf32>
    %cst_9 = arith.constant dense<0.000000e+00> : vector<32x192xf32>
    %10 = tpu.matmul %9, %7, %cst_9 {dimension_numbers = #tpu.dot_dimension_numbers<[1], [0], [0], [1], [0, 0, 1, 1], [], []>} : vector<32x96xf32>, vector<96x192xf32>, vector<32x192xf32> -> vector<32x192xf32>
    %cst_10 = arith.constant dense<0.000000e+00> : vector<64x192xf32>
    %11 = tpu.matmul %6, %10, %cst_10 {dimension_numbers = #tpu.dot_dimension_numbers<[1], [0], [0], [1], [0, 0, 1, 1], [], []>} : vector<64x32xf32>, vector<32x192xf32>, vector<64x192xf32> -> vector<64x192xf32>
    %12 = arith.subf %1, %11 : vector<64x192xf32>
    %13 = math.absf %12 : vector<64x192xf32>
    %14 = vector.shape_cast %13 : vector<64x192xf32> to vector<1x64x192xf32>
    %cst_11 = arith.constant dense<0.000000e+00> : vector<1xf32>
    %15 = vector.multi_reduction <add>, %14, %cst_11 [1, 2] : vector<1x64x192xf32> to vector<1xf32>
    %16 = vector.shape_cast %15 : vector<1xf32> to vector<1x1x1xf32>
    %17 = vector.extract %16[0, 0, 0] : f32 from vector<1x1x1xf32>
    %c0_i32 = arith.constant 0 : i32
    %18 = vector.broadcast %c0_i32 : i32 to vector<1x128xi32>
    %19 = arith.cmpi eq, %2, %18 : vector<1x128xi32>
    %cst_12 = arith.constant 0.000000e+00 : f32
    %20 = vector.broadcast %17 : f32 to vector<1x128xf32>
    %21 = vector.broadcast %cst_12 : f32 to vector<1x128xf32>
    %22 = arith.select %19, %20, %21 : vector<1x128xi1>, vector<1x128xf32>
    %23 = arith.addf %3, %22 : vector<1x128xf32>
    %c384 = arith.constant 384 : index
    %c0_13 = arith.constant 0 : index
    %24 = vector.load %arg2[%c384, %c0_13] : memref<768x256xf32, #tpu.memory_space<vmem>>, vector<16x32xf32>
    %c400 = arith.constant 400 : index
    %c0_14 = arith.constant 0 : index
    %25 = vector.load %arg2[%c400, %c0_14] : memref<768x256xf32, #tpu.memory_space<vmem>>, vector<96x48xf32>
    %c496 = arith.constant 496 : index
    %c0_15 = arith.constant 0 : index
    %26 = vector.load %arg2[%c496, %c0_15] : memref<768x256xf32, #tpu.memory_space<vmem>>, vector<32x16xf32>
    %c528 = arith.constant 528 : index
    %c0_16 = arith.constant 0 : index
    %27 = vector.load %arg2[%c528, %c0_16] : memref<768x256xf32, #tpu.memory_space<vmem>>, vector<48x96xf32>
    %cst_17 = arith.constant dense<0.000000e+00> : vector<16x96xf32>
    %28 = tpu.matmul %24, %9, %cst_17 {dimension_numbers = #tpu.dot_dimension_numbers<[1], [0], [0], [1], [0, 0, 1, 1], [], []>} : vector<16x32xf32>, vector<32x96xf32>, vector<16x96xf32> -> vector<16x96xf32>
    %cst_18 = arith.constant dense<0.000000e+00> : vector<16x48xf32>
    %29 = tpu.matmul %28, %25, %cst_18 {dimension_numbers = #tpu.dot_dimension_numbers<[1], [0], [0], [1], [0, 0, 1, 1], [], []>} : vector<16x96xf32>, vector<96x48xf32>, vector<16x48xf32> -> vector<16x48xf32>
    %cst_19 = arith.constant dense<0.000000e+00> : vector<16x96xf32>
    %30 = tpu.matmul %29, %27, %cst_19 {dimension_numbers = #tpu.dot_dimension_numbers<[1], [0], [0], [1], [0, 0, 1, 1], [], []>} : vector<16x48xf32>, vector<48x96xf32>, vector<16x96xf32> -> vector<16x96xf32>
    %cst_20 = arith.constant dense<0.000000e+00> : vector<32x96xf32>
    %31 = tpu.matmul %26, %30, %cst_20 {dimension_numbers = #tpu.dot_dimension_numbers<[1], [0], [0], [1], [0, 0, 1, 1], [], []>} : vector<32x16xf32>, vector<16x96xf32>, vector<32x96xf32> -> vector<32x96xf32>
    %32 = arith.subf %9, %31 : vector<32x96xf32>
    %33 = math.absf %32 : vector<32x96xf32>
    %34 = vector.shape_cast %33 : vector<32x96xf32> to vector<1x32x96xf32>
    %cst_21 = arith.constant dense<0.000000e+00> : vector<1xf32>
    %35 = vector.multi_reduction <add>, %34, %cst_21 [1, 2] : vector<1x32x96xf32> to vector<1xf32>
    %36 = vector.shape_cast %35 : vector<1xf32> to vector<1x1x1xf32>
    %37 = vector.extract %36[0, 0, 0] : f32 from vector<1x1x1xf32>
    %c1_i32 = arith.constant 1 : i32
    %38 = vector.broadcast %c1_i32 : i32 to vector<1x128xi32>
    %39 = arith.cmpi eq, %2, %38 : vector<1x128xi32>
    %cst_22 = arith.constant 0.000000e+00 : f32
    %40 = vector.broadcast %37 : f32 to vector<1x128xf32>
    %41 = vector.broadcast %cst_22 : f32 to vector<1x128xf32>
    %42 = arith.select %39, %40, %41 : vector<1x128xi1>, vector<1x128xf32>
    %43 = arith.addf %23, %42 : vector<1x128xf32>
    %c576 = arith.constant 576 : index
    %c0_23 = arith.constant 0 : index
    %44 = vector.load %arg2[%c576, %c0_23] : memref<768x256xf32, #tpu.memory_space<vmem>>, vector<8x16xf32>
    %c584 = arith.constant 584 : index
    %c0_24 = arith.constant 0 : index
    %45 = vector.load %arg2[%c584, %c0_24] : memref<768x256xf32, #tpu.memory_space<vmem>>, vector<48x24xf32>
    %c632 = arith.constant 632 : index
    %c0_25 = arith.constant 0 : index
    %46 = vector.load %arg2[%c632, %c0_25] : memref<768x256xf32, #tpu.memory_space<vmem>>, vector<16x8xf32>
    %c648 = arith.constant 648 : index
    %c0_26 = arith.constant 0 : index
    %47 = vector.load %arg2[%c648, %c0_26] : memref<768x256xf32, #tpu.memory_space<vmem>>, vector<24x48xf32>
    %cst_27 = arith.constant dense<0.000000e+00> : vector<8x48xf32>
    %48 = tpu.matmul %44, %29, %cst_27 {dimension_numbers = #tpu.dot_dimension_numbers<[1], [0], [0], [1], [0, 0, 1, 1], [], []>} : vector<8x16xf32>, vector<16x48xf32>, vector<8x48xf32> -> vector<8x48xf32>
    %cst_28 = arith.constant dense<0.000000e+00> : vector<8x24xf32>
    %49 = tpu.matmul %48, %45, %cst_28 {dimension_numbers = #tpu.dot_dimension_numbers<[1], [0], [0], [1], [0, 0, 1, 1], [], []>} : vector<8x48xf32>, vector<48x24xf32>, vector<8x24xf32> -> vector<8x24xf32>
    %cst_29 = arith.constant dense<0.000000e+00> : vector<8x48xf32>
    %50 = tpu.matmul %49, %47, %cst_29 {dimension_numbers = #tpu.dot_dimension_numbers<[1], [0], [0], [1], [0, 0, 1, 1], [], []>} : vector<8x24xf32>, vector<24x48xf32>, vector<8x48xf32> -> vector<8x48xf32>
    %cst_30 = arith.constant dense<0.000000e+00> : vector<16x48xf32>
    %51 = tpu.matmul %46, %50, %cst_30 {dimension_numbers = #tpu.dot_dimension_numbers<[1], [0], [0], [1], [0, 0, 1, 1], [], []>} : vector<16x8xf32>, vector<8x48xf32>, vector<16x48xf32> -> vector<16x48xf32>
    %52 = arith.subf %29, %51 : vector<16x48xf32>
    %53 = math.absf %52 : vector<16x48xf32>
    %54 = vector.shape_cast %53 : vector<16x48xf32> to vector<1x16x48xf32>
    %cst_31 = arith.constant dense<0.000000e+00> : vector<1xf32>
    %55 = vector.multi_reduction <add>, %54, %cst_31 [1, 2] : vector<1x16x48xf32> to vector<1xf32>
    %56 = vector.shape_cast %55 : vector<1xf32> to vector<1x1x1xf32>
    %57 = vector.extract %56[0, 0, 0] : f32 from vector<1x1x1xf32>
    %c2_i32 = arith.constant 2 : i32
    %58 = vector.broadcast %c2_i32 : i32 to vector<1x128xi32>
    %59 = arith.cmpi eq, %2, %58 : vector<1x128xi32>
    %cst_32 = arith.constant 0.000000e+00 : f32
    %60 = vector.broadcast %57 : f32 to vector<1x128xf32>
    %61 = vector.broadcast %cst_32 : f32 to vector<1x128xf32>
    %62 = arith.select %59, %60, %61 : vector<1x128xi1>, vector<1x128xf32>
    %63 = arith.addf %43, %62 : vector<1x128xf32>
    %c672 = arith.constant 672 : index
    %c0_33 = arith.constant 0 : index
    %64 = vector.load %arg2[%c672, %c0_33] : memref<768x256xf32, #tpu.memory_space<vmem>>, vector<4x8xf32>
    %c680 = arith.constant 680 : index
    %c0_34 = arith.constant 0 : index
    %65 = vector.load %arg2[%c680, %c0_34] : memref<768x256xf32, #tpu.memory_space<vmem>>, vector<24x12xf32>
    %c704 = arith.constant 704 : index
    %c0_35 = arith.constant 0 : index
    %66 = vector.load %arg2[%c704, %c0_35] : memref<768x256xf32, #tpu.memory_space<vmem>>, vector<8x4xf32>
    %c712 = arith.constant 712 : index
    %c0_36 = arith.constant 0 : index
    %67 = vector.load %arg2[%c712, %c0_36] : memref<768x256xf32, #tpu.memory_space<vmem>>, vector<12x24xf32>
    %cst_37 = arith.constant dense<0.000000e+00> : vector<4x24xf32>
    %68 = tpu.matmul %64, %49, %cst_37 {dimension_numbers = #tpu.dot_dimension_numbers<[1], [0], [0], [1], [0, 0, 1, 1], [], []>} : vector<4x8xf32>, vector<8x24xf32>, vector<4x24xf32> -> vector<4x24xf32>
    %cst_38 = arith.constant dense<0.000000e+00> : vector<4x12xf32>
    %69 = tpu.matmul %68, %65, %cst_38 {dimension_numbers = #tpu.dot_dimension_numbers<[1], [0], [0], [1], [0, 0, 1, 1], [], []>} : vector<4x24xf32>, vector<24x12xf32>, vector<4x12xf32> -> vector<4x12xf32>
    %cst_39 = arith.constant dense<0.000000e+00> : vector<4x24xf32>
    %70 = tpu.matmul %69, %67, %cst_39 {dimension_numbers = #tpu.dot_dimension_numbers<[1], [0], [0], [1], [0, 0, 1, 1], [], []>} : vector<4x12xf32>, vector<12x24xf32>, vector<4x24xf32> -> vector<4x24xf32>
    %cst_40 = arith.constant dense<0.000000e+00> : vector<8x24xf32>
    %71 = tpu.matmul %66, %70, %cst_40 {dimension_numbers = #tpu.dot_dimension_numbers<[1], [0], [0], [1], [0, 0, 1, 1], [], []>} : vector<8x4xf32>, vector<4x24xf32>, vector<8x24xf32> -> vector<8x24xf32>
    %72 = arith.subf %49, %71 : vector<8x24xf32>
    %73 = math.absf %72 : vector<8x24xf32>
    %74 = vector.shape_cast %73 : vector<8x24xf32> to vector<1x8x24xf32>
    %cst_41 = arith.constant dense<0.000000e+00> : vector<1xf32>
    %75 = vector.multi_reduction <add>, %74, %cst_41 [1, 2] : vector<1x8x24xf32> to vector<1xf32>
    %76 = vector.shape_cast %75 : vector<1xf32> to vector<1x1x1xf32>
    %77 = vector.extract %76[0, 0, 0] : f32 from vector<1x1x1xf32>
    %c3_i32 = arith.constant 3 : i32
    %78 = vector.broadcast %c3_i32 : i32 to vector<1x128xi32>
    %79 = arith.cmpi eq, %2, %78 : vector<1x128xi32>
    %cst_42 = arith.constant 0.000000e+00 : f32
    %80 = vector.broadcast %77 : f32 to vector<1x128xf32>
    %81 = vector.broadcast %cst_42 : f32 to vector<1x128xf32>
    %82 = arith.select %79, %80, %81 : vector<1x128xi1>, vector<1x128xf32>
    %83 = arith.addf %63, %82 : vector<1x128xf32>
    %c728 = arith.constant 728 : index
    %c0_43 = arith.constant 0 : index
    %84 = vector.load %arg2[%c728, %c0_43] : memref<768x256xf32, #tpu.memory_space<vmem>>, vector<2x4xf32>
    %c736 = arith.constant 736 : index
    %c0_44 = arith.constant 0 : index
    %85 = vector.load %arg2[%c736, %c0_44] : memref<768x256xf32, #tpu.memory_space<vmem>>, vector<12x6xf32>
    %c752 = arith.constant 752 : index
    %c0_45 = arith.constant 0 : index
    %86 = vector.load %arg2[%c752, %c0_45] : memref<768x256xf32, #tpu.memory_space<vmem>>, vector<4x2xf32>
    %c760 = arith.constant 760 : index
    %c0_46 = arith.constant 0 : index
    %87 = vector.load %arg2[%c760, %c0_46] : memref<768x256xf32, #tpu.memory_space<vmem>>, vector<6x12xf32>
    %cst_47 = arith.constant dense<0.000000e+00> : vector<2x12xf32>
    %88 = tpu.matmul %84, %69, %cst_47 {dimension_numbers = #tpu.dot_dimension_numbers<[1], [0], [0], [1], [0, 0, 1, 1], [], []>} : vector<2x4xf32>, vector<4x12xf32>, vector<2x12xf32> -> vector<2x12xf32>
    %cst_48 = arith.constant dense<0.000000e+00> : vector<2x6xf32>
    %89 = tpu.matmul %88, %85, %cst_48 {dimension_numbers = #tpu.dot_dimension_numbers<[1], [0], [0], [1], [0, 0, 1, 1], [], []>} : vector<2x12xf32>, vector<12x6xf32>, vector<2x6xf32> -> vector<2x6xf32>
    %cst_49 = arith.constant dense<0.000000e+00> : vector<2x12xf32>
    %90 = tpu.matmul %89, %87, %cst_49 {dimension_numbers = #tpu.dot_dimension_numbers<[1], [0], [0], [1], [0, 0, 1, 1], [], []>} : vector<2x6xf32>, vector<6x12xf32>, vector<2x12xf32> -> vector<2x12xf32>
    %cst_50 = arith.constant dense<0.000000e+00> : vector<4x12xf32>
    %91 = tpu.matmul %86, %90, %cst_50 {dimension_numbers = #tpu.dot_dimension_numbers<[1], [0], [0], [1], [0, 0, 1, 1], [], []>} : vector<4x2xf32>, vector<2x12xf32>, vector<4x12xf32> -> vector<4x12xf32>
    %92 = arith.subf %69, %91 : vector<4x12xf32>
    %93 = math.absf %92 : vector<4x12xf32>
    %94 = vector.shape_cast %93 : vector<4x12xf32> to vector<1x4x12xf32>
    %cst_51 = arith.constant dense<0.000000e+00> : vector<1xf32>
    %95 = vector.multi_reduction <add>, %94, %cst_51 [1, 2] : vector<1x4x12xf32> to vector<1xf32>
    %96 = vector.shape_cast %95 : vector<1xf32> to vector<1x1x1xf32>
    %97 = vector.extract %96[0, 0, 0] : f32 from vector<1x1x1xf32>
    %c4_i32 = arith.constant 4 : i32
    %98 = vector.broadcast %c4_i32 : i32 to vector<1x128xi32>
    %99 = arith.cmpi eq, %2, %98 : vector<1x128xi32>
    %cst_52 = arith.constant 0.000000e+00 : f32
    %100 = vector.broadcast %97 : f32 to vector<1x128xf32>
    %101 = vector.broadcast %cst_52 : f32 to vector<1x128xf32>
    %102 = arith.select %99, %100, %101 : vector<1x128xi1>, vector<1x128xf32>
    %103 = arith.addf %83, %102 : vector<1x128xf32>
    %c0_53 = arith.constant 0 : index
    %c0_54 = arith.constant 0 : index
    %c0_55 = arith.constant 0 : index
    %104 = vector.load %arg3[%c0_53, %c0_54, %c0_55] : memref<1x1x128xf32, #tpu.memory_space<vmem>>, vector<1x1x128xf32>
    %105 = vector.shape_cast %104 : vector<1x1x128xf32> to vector<1x128xf32>
    %106 = vector.shape_cast %103 : vector<1x128xf32> to vector<1x1x128xf32>
    tpu.vector_store %arg3[%c0_53, %c0_54, %c0_55], %106 {strides = array<i32>} : memref<1x1x128xf32, #tpu.memory_space<vmem>>, vector<1x1x128xf32>,
    return
  }
  func.func @transform_0(%arg0: i32) -> (i32, i32, i32) {
    %c0_i32 = arith.constant 0 : i32
    %c0_i32_0 = arith.constant 0 : i32
    %c0_i32_1 = arith.constant 0 : i32
    return %arg0, %c0_i32, %c0_i32_0 : i32, i32, i32
  }
  func.func @transform_1(%arg0: i32) -> (i32, i32) {
    %c0_i32 = arith.constant 0 : i32
    %c0_i32_0 = arith.constant 0 : i32
    %c0_i32_1 = arith.constant 0 : i32
    return %c0_i32, %c0_i32_0 : i32, i32
  }
  func.func @transform_2(%arg0: i32) -> (i32, i32, i32) {
    %c0_i32 = arith.constant 0 : i32
    %c0_i32_0 = arith.constant 0 : i32
    %c0_i32_1 = arith.constant 0 : i32
    return %arg0, %c0_i32, %c0_i32_0 : i32, i32, i32
  }
}

</mosaic_0001>

<llo_original>
// kernel: total_loss.1
$region0: #{total_loss.1}
  #allocation0 [shape = 'u32[]', space=smem, size = 0x4, offset = 0x4, fixed_abs, tag = 'smem constant byte address 0x4 - core index']
  #allocation1 [shape = 'u32[144,128]{1,0:T(1,128)}', space=vmem, size = 0x12000, scoped, tag = 'internal scratch']
  %s0 = inlined_call_operand.vmem [shape: f32[2,64,192], index: 0, kind: input, shape index: {}]
  %s1 = inlined_call_operand.vmem [shape: f32[768,256], index: 1, kind: input, shape index: {}]
  %s2 = inlined_call_operand.vmem [shape: f32[2,1,128], index: 2, kind: output, shape index: {}]
  %s3 = sld [smem:[#allocation0]]
  $region41: #{total_loss.1} parent=0
    _
  %s5 = ssub.s32 1, %s3
  %s6 = scalar_select 0, %s5, %s3
  loop: start=0, step=1, limit=4
  $region2: #{total_loss.1} parent=0 // loop_pre_header
    _
  $region3: #{total_loss.1} parent=0 // loop_header
    %s8 = sphi 0, %s12
    %p9 = scmp.ge.s32.totalorder %s8, 4
    %s18 = sphi 0, %s20
    %s21 = sphi 0, %s18
    %s22 = sphi 0, %s21
    %s38 = sphi 0, %s22
    %s42 = sphi 0, %s42
    %s44 = sphi 0, %s42
    %s45 = sphi 0, %s44
    %s59 = sphi 0, %s45
    %s65 = sphi 0, %s67
    %s68 = sphi 0, %s65
    %s69 = sphi 0, %s68
    %s85 = sphi 0, %s69
  $region4: #{total_loss.1} parent=0 // loop_header_branch
    %11 = sbr.rel (%p9) target = $region8
  $region5: #{total_loss.1} parent=0 // loop_body
    %s13 = ssub.s32 %s8, 1
    %s14 = ssub.s32 %s8, 2
    %s15 = sadd.s32 %s8, 1
    %s16 = ssub.s32 %s8, %s15
    %p17 = scmp.eq.s32.totalorder %s16, 0
    %s19 = sadd.s32 %s18, 1
    %s20 = scalar_select %p17, %s18, %s19
    %p23 = pneg %p17
    %p24 = scmp.eq.s32.totalorder %s8, 1
    %p25 = por %p23, %p24
    %p26 = scmp.ne.s32.totalorder %s18, %s21
    %p27 = scmp.eq.s32.totalorder %s8, 0
    %p28 = por %p26, %p27
    %p29 = scmp.ne.s32.totalorder %s18, %s21
    %p30 = scmp.eq.s32.totalorder %s13, 1
    %p31 = por %p29, %p30
    %p32 = scmp.ne.s32.totalorder %s21, %s22
    %p33 = scmp.eq.s32.totalorder %s13, 0
    %p34 = por %p32, %p33
    %p35 = scmp.ne.s32.totalorder %s21, %s22
    %p36 = scmp.eq.s32.totalorder %s14, 1
    %p37 = por %p35, %p36
    %p39 = scmp.ne.s32.totalorder %s22, %s38
    %p40 = scmp.eq.s32.totalorder %s14, 0
    %p41 = por %p39, %p40
    %s43 = sadd.s32 %s42, 1
    %p46 = scmp.eq.s32.totalorder %s8, 1
    %p47 = scmp.ne.s32.totalorder %s42, %s44
    %p48 = scmp.eq.s32.totalorder %s8, 0
    %p49 = por %p47, %p48
    %p50 = scmp.ne.s32.totalorder %s42, %s44
    %p51 = scmp.eq.s32.totalorder %s13, 1
    %p52 = por %p50, %p51
    %p53 = scmp.ne.s32.totalorder %s44, %s45
    %p54 = scmp.eq.s32.totalorder %s13, 0
    %p55 = por %p53, %p54
    %p56 = scmp.ne.s32.totalorder %s44, %s45
    %p57 = scmp.eq.s32.totalorder %s14, 1
    %p58 = por %p56, %p57
    %p60 = scmp.ne.s32.totalorder %s45, %s59
    %p61 = scmp.eq.s32.totalorder %s14, 0
    %p62 = por %p60, %p61
    %s63 = ssub.s32 %s8, %s15
    %p64 = scmp.eq.s32.totalorder %s63, 0
    %s66 = sadd.s32 %s65, 1
    %s67 = scalar_select %p64, %s65, %s66
    %p70 = pneg %p64
    %p71 = scmp.eq.s32.totalorder %s8, 1
    %p72 = por %p70, %p71
    %p73 = scmp.ne.s32.totalorder %s65, %s68
    %p74 = scmp.eq.s32.totalorder %s8, 0
    %p75 = por %p73, %p74
    %p76 = scmp.ne.s32.totalorder %s65, %s68
    %p77 = scmp.eq.s32.totalorder %s13, 1
    %p78 = por %p76, %p77
    %p79 = scmp.ne.s32.totalorder %s68, %s69
    %p80 = scmp.eq.s32.totalorder %s13, 0
    %p81 = por %p79, %p80
    %p82 = scmp.ne.s32.totalorder %s68, %s69
    %p83 = scmp.eq.s32.totalorder %s14, 1
    %p84 = por %p82, %p83
    %p86 = scmp.ne.s32.totalorder %s69, %s85
    %p87 = scmp.eq.s32.totalorder %s14, 0
    %p88 = por %p86, %p87
    %p89 = scmp.le.s32.totalorder 1, %s8
    %p90 = scmp.lt.s32.totalorder %s8, 3
    %p91 = pnand %p89, %p90
    %p92 = pneg %p91
    // Predicated region
    $region9: #{total_loss.1} parent=5 // pred_check
      _
    $region10: #{total_loss.1} parent=5 // pred_check_branch
      %94 = sbr.rel (%p91) target = $region12
    $region11: #{total_loss.1} parent=5 // pred_region
      %s95 = ssub.s32 %s8, 1
      // Predicated region
      $region13: #{total_loss.1} parent=11 // pred_check
        %p96 = pneg %p55
      $region14: #{total_loss.1} parent=11 // pred_check_branch
        %98 = sbr.rel (%p96) target = $region16
      $region15: #{total_loss.1} parent=11 // pred_region
        _
      $region16: #{total_loss.1} parent=11 // pred_fallthru
        _
    $region12: #{total_loss.1} parent=5 // pred_fallthru
      _
    %p99 = scmp.lt.s32.totalorder %s8, 2
    // Predicated region
    $region17: #{total_loss.1} parent=5 // pred_check
      %p100 = pneg %p99
    $region18: #{total_loss.1} parent=5 // pred_check_branch
      %102 = sbr.rel (%p100) target = $region20
    $region19: #{total_loss.1} parent=5 // pred_region
      // Predicated region
      $region21: #{total_loss.1} parent=19 // pred_check
        %p103 = pneg %p28
      $region22: #{total_loss.1} parent=19 // pred_check_branch
        %105 = sbr.rel (%p103) target = $region24
      $region23: #{total_loss.1} parent=19 // pred_region
        %p106 = scmp.lt.s32.totalorder %s8, 1
        %s107 = scalar_select %p106, %s8, 1
        %s108 = smul.addr %s107, 16
        %s109 = smul.addr %s108, 8
        %s110 = scalar_lea.vmem %s0, %s109
      $region24: #{total_loss.1} parent=19 // pred_fallthru
        _
    $region20: #{total_loss.1} parent=5 // pred_fallthru
      _
    %p111 = scmp.le.s32.totalorder 1, %s8
    %p112 = scmp.lt.s32.totalorder %s8, 3
    %p113 = pnand %p111, %p112
    %p114 = pneg %p113
    // Predicated region
    $region25: #{total_loss.1} parent=5 // pred_check
      _
    $region26: #{total_loss.1} parent=5 // pred_check_branch
      %116 = sbr.rel (%p113) target = $region28
    $region27: #{total_loss.1} parent=5 // pred_region
      %s117 = ssub.s32 %s8, 1
      %p118 = scmp.lt.s32.totalorder %s13, 1
      %s119 = scalar_select %p118, %s13, 1
      %s120 = smul.addr %s119, 16
      %s121 = smul.addr %s120, 8
      %s122 = scalar_lea.vmem %s0, %s121
      %p123 = pneg %p34
      %p124 = pneg %p31
      %p125 = pneg %p55
      %p126 = pneg %p52
      %p127 = pneg %p81
      %p128 = pneg %p78
      %p129 = scmp.lt.s32.totalorder %s13, 1
      %s130 = scalar_select %p129, %s13, 1
      %s131 = scalar_lea.vmem %s2, %s130
      %p132 = scmp.lt.s32.totalorder %s13, 1
      %s133 = scalar_select %p132, %s13, 1
      %s134 = smul.addr %s133, 16
      %s135 = smul.addr %s134, 8
      %s136 = scalar_lea.vmem %s0, %s135
      %p137 = scmp.lt.s32.totalorder %s13, 1
      %s138 = scalar_select %p137, %s13, 1
      %s139 = scalar_lea.vmem %s2, %s138
      %v140 = vld [vmem:[%s136] sm:$0xff]
      %v141 = vld [vmem:[%s136 + $0x8] sm:$0xff]
      %v142 = vld [vmem:[%s136 + $0x10] sm:$0xff]
      %v143 = vld [vmem:[%s136 + $0x18] sm:$0xff]
      %v144 = vld [vmem:[%s136 + $0x20] sm:$0xff]
      %v145 = vld [vmem:[%s136 + $0x28] sm:$0xff]
      %v146 = vld [vmem:[%s136 + $0x30] sm:$0xff]
      %v147 = vld [vmem:[%s136 + $0x38] sm:$0xff]
      %v148 = vld [vmem:[%s136 + $0x40] sm:$0xff]
      %v149 = vld [vmem:[%s136 + $0x48] sm:$0xff]
      %v150 = vld [vmem:[%s136 + $0x50] sm:$0xff]
      %v151 = vld [vmem:[%s136 + $0x58] sm:$0xff]
      %v152 = vld [vmem:[%s136 + $0x60] sm:$0xff]
      %v153 = vld [vmem:[%s136 + $0x68] sm:$0xff]
      %v154 = vld [vmem:[%s136 + $0x70] sm:$0xff]
      %v155 = vld [vmem:[%s136 + $0x78] sm:$0xff]
      %v156 = vlaneseq
      %v157 = vand.u32 %v156, 127
      %v158 = vld [vmem:[%s1] sm:$0xff]
      %v159 = vld [vmem:[%s1 + $0x10] sm:$0xff]
      %v160 = vld [vmem:[%s1 + $0x20] sm:$0xff]
      %v161 = vld [vmem:[%s1 + $0x30] sm:$0xff]
      %v162 = vld [vmem:[%s1 + $0x40] sm:$0xff]
      %v163 = vld [vmem:[%s1 + $0x50] sm:$0xff]
      %v164 = vld [vmem:[%s1 + $0x60] sm:$0xff]
      %v165 = vld [vmem:[%s1 + $0x70] sm:$0xff]
      %v166 = vld [vmem:[%s1 + $0x80] sm:$0xff]
      %v167 = vld [vmem:[%s1 + $0x90] sm:$0xff]
      %v168 = vld [vmem:[%s1 + $0xa0] sm:$0xff]
      %v169 = vld [vmem:[%s1 + $0xb0] sm:$0xff]
      %v170 = vld [vmem:[%s1 + $0xc0] sm:$0xff]
      %v171 = vld [vmem:[%s1 + $0xd0] sm:$0xff]
      %v172 = vld [vmem:[%s1 + $0xe0] sm:$0xff]
      %v173 = vld [vmem:[%s1 + $0xf0] sm:$0xff]
      %v174 = vld [vmem:[%s1 + $0x100] sm:$0xff]
      %v175 = vld [vmem:[%s1 + $0x110] sm:$0xff]
      %v176 = vld [vmem:[%s1 + $0x120] sm:$0xff]
      %v177 = vld [vmem:[%s1 + $0x130] sm:$0xff]
      %v178 = vld [vmem:[%s1 + $0x140] sm:$0xff]
      %v179 = vld [vmem:[%s1 + $0x150] sm:$0xff]
      %v180 = vld [vmem:[%s1 + $0x160] sm:$0xff]
      %v181 = vld [vmem:[%s1 + $0x170] sm:$0xff]
      %v182 = vld [vmem:[%s1 + $0x180] sm:$0xff]
      %v183 = vld [vmem:[%s1 + $0x190] sm:$0xff]
      %v184 = vld [vmem:[%s1 + $0x1a0] sm:$0xff]
      %v185 = vld [vmem:[%s1 + $0x1b0] sm:$0xff]
      %v186 = vld [vmem:[%s1 + $0x1c0] sm:$0xff]
      %v187 = vld [vmem:[%s1 + $0x1d0] sm:$0xff]
      %v188 = vld [vmem:[%s1 + $0x1e0] sm:$0xff]
      %v189 = vld [vmem:[%s1 + $0x1f0] sm:$0xff]
      %v190 = vld [vmem:[%s1 + $0x200] sm:$0xff]
      %v191 = vld [vmem:[%s1 + $0x210] sm:$0xff]
      %v192 = vld [vmem:[%s1 + $0x220] sm:$0xff]
      %v193 = vld [vmem:[%s1 + $0x230] sm:$0xff]
      %v194 = vld [vmem:[%s1 + $0x240] sm:$0xff]
      %v195 = vld [vmem:[%s1 + $0x248] sm:$0xff]
      %v196 = vld [vmem:[%s1 + $0x250] sm:$0xff]
      %v197 = vld [vmem:[%s1 + $0x258] sm:$0xff]
      %v198 = vld [vmem:[%s1 + $0x260] sm:$0xff]
      %v199 = vld [vmem:[%s1 + $0x268] sm:$0xff]
      %v200 = vld [vmem:[%s1 + $0x270] sm:$0xff]
      %v201 = vld [vmem:[%s1 + $0x278] sm:$0xff]
      %v202 = vld [vmem:[%s1 + $0x280] sm:$0xff]
      %v203 = vld [vmem:[%s1 + $0x288] sm:$0xff]
      %v204 = vld [vmem:[%s1 + $0x290] sm:$0xff]
      %v205 = vld [vmem:[%s1 + $0x298] sm:$0xff]
      %v206 = vld [vmem:[%s1 + $0x2a0] sm:$0xff]
      %v207 = vld [vmem:[%s1 + $0x2a8] sm:$0xff]
      %v208 = vld [vmem:[%s1 + $0x2b0] sm:$0xff]
      %v209 = vld [vmem:[%s1 + $0x2b8] sm:$0xff]
      %v210 = vld [vmem:[%s1 + $0x2c0] sm:$0xff]
      %v211 = vld [vmem:[%s1 + $0x2c8] sm:$0xff]
      %v212 = vld [vmem:[%s1 + $0x2d0] sm:$0xff]
      %v213 = vld [vmem:[%s1 + $0x2d8] sm:$0xff]
      %v214 = vld [vmem:[%s1 + $0x2e0] sm:$0xff]
      %v215 = vld [vmem:[%s1 + $0x2e8] sm:$0xff]
      %v216 = vld [vmem:[%s1 + $0x2f0] sm:$0xff]
      %v217 = vld [vmem:[%s1 + $0x2f8] sm:$0xff]
      %vm218 = vcmask 523264
      %v220 = vsel %vm218, %v158, 0
      %v223 = vsel %vm218, %v159, 0
      %v226 = vsel %vm218, %v160, 0
      %v229 = vsel %vm218, %v161, 0
      %231 = vmatprep.subr.mxu0 %v141
      %232 = vmatpush1.msra.mxu0 %v140
      %233 = vmatprep.subr.mxu0 %v143
      %234 = vmatpush1.msra.mxu0 %v142
      %235 = vmatprep.subr.mxu0 %v145
      %236 = vmatpush1.msra.mxu0 %v144
      %237 = vmatprep.subr.mxu0 %v147
      %238 = vmatpush1.msra.mxu0 %v146
      %239 = vmatprep.subr.mxu0 %v149
      %240 = vmatpush1.msra.mxu0 %v148
      %241 = vmatprep.subr.mxu0 %v151
      %242 = vmatpush1.msra.mxu0 %v150
      %243 = vmatprep.subr.mxu0 %v153
      %244 = vmatpush1.msra.mxu0 %v152
      %245 = vmatprep.subr.mxu0 %v155
      %246 = vmatpush1.msra.mxu0 %v154
      %247 = vmatprep.subr.mxu0 0.0
      %248 = vmatpush1.msra.mxu0 0.0
      %249 = vmatprep.subr.mxu0 0.0
      %250 = vmatpush1.msra.mxu0 0.0
      %251 = vmatprep.subr.mxu0 0.0
      %252 = vmatpush1.msra.mxu0 0.0
      %253 = vmatprep.subr.mxu0 0.0
      %254 = vmatpush1.msra.mxu0 0.0
      %255 = vmatprep.subr.mxu0 0.0
      %256 = vmatpush1.msra.mxu0 0.0
      %257 = vmatprep.subr.mxu0 0.0
      %258 = vmatpush1.msra.mxu0 0.0
      %259 = vmatprep.subr.mxu0 0.0
      %260 = vmatpush1.msra.mxu0 0.0
      %261 = vmatprep.subr.mxu0 0.0
      %262 = vmatpush1.msra.mxu0 0.0
      %263 = vmatprep.subr.mxu0 0.0
      %264 = vmatpush1.msra.mxu0 0.0
      %265 = vmatprep.subr.mxu0 0.0
      %266 = vmatpush1.msra.mxu0 0.0
      %267 = vmatprep.subr.mxu0 0.0
      %268 = vmatpush1.msra.mxu0 0.0
      %269 = vmatprep.subr.mxu0 0.0
      %270 = vmatpush1.msra.mxu0 0.0
      %271 = vmatprep.subr.mxu0 0.0
      %272 = vmatpush1.msra.mxu0 0.0
      %273 = vmatprep.subr.mxu0 0.0
      %274 = vmatpush1.msra.mxu0 0.0
      %275 = vmatprep.subr.mxu0 0.0
      %276 = vmatpush1.msra.mxu0 0.0
      %277 = vmatprep.subr.mxu0 0.0
      %278 = vmatpush1.msra.mxu0 0.0
      %279 = vmatprep.subr.mxu0 0.0
      %280 = vmatpush1.msra.mxu0 0.0
      %281 = vmatprep.subr.mxu0 0.0
      %282 = vmatpush1.msra.mxu0 0.0
      %283 = vmatprep.subr.mxu0 0.0
      %284 = vmatpush1.msra.mxu0 0.0
      %285 = vmatprep.subr.mxu0 0.0
      %286 = vmatpush1.msra.mxu0 0.0
      %287 = vmatprep.subr.mxu0 0.0
      %288 = vmatpush1.msra.mxu0 0.0
      %289 = vmatprep.subr.mxu0 0.0
      %290 = vmatpush1.msra.mxu0 0.0
      %291 = vmatprep.subr.mxu0 0.0
      %292 = vmatpush1.msra.mxu0 0.0
      %293 = vmatprep.subr.mxu0 0.0
      %294 = vmatpush1.msra.mxu0 0.0
      %295 = vmatprep.mubr.f32.mxu0 0.0
      %296 = vmatmul.mubr.f32.gmra.mrb[0].mxu0 %v220
      %v297 = vpop.f32.mrb[0].mxu0
      %v298 = vadd.f32 0.0, %v297
      %v299 = vpop.f32.mrb[0].mxu0
      %v300 = vadd.f32 0.0, %v299
      %301 = vmatprep.mubr.f32.mxu0 0.0
      %302 = vmatmul.mubr.f32.gmra.mrb[0].mxu0 %v223
      %v303 = vpop.f32.mrb[0].mxu0
      %v304 = vadd.f32 0.0, %v303
      %v305 = vpop.f32.mrb[0].mxu0
      %v306 = vadd.f32 0.0, %v305
      %307 = vmatprep.mubr.f32.mxu0 0.0
      %308 = vmatmul.mubr.f32.gmra.mrb[0].mxu0 %v226
      %v309 = vpop.f32.mrb[0].mxu0
      %v310 = vadd.f32 0.0, %v309
      %v311 = vpop.f32.mrb[0].mxu0
      %v312 = vadd.f32 0.0, %v311
      %313 = vmatprep.mubr.f32.mxu0 0.0
      %314 = vmatmul.mubr.f32.gmra.mrb[0].mxu0 %v229
      %v315 = vpop.f32.mrb[0].mxu0
      %v316 = vadd.f32 0.0, %v315
      %v317 = vpop.f32.mrb[0].mxu0
      %v318 = vadd.f32 0.0, %v317
      %319 = vdwg.mxu0
      %v321 = vsel %vm218, %v300, 0
      %v324 = vsel %vm218, %v306, 0
      %v327 = vsel %vm218, %v312, 0
      %v330 = vsel %vm218, %v318, 0
      %332 = vmatprep.subr.mxu0 0.0
      %333 = vmatpush1.msra.mxu0 %v162
      %334 = vmatprep.subr.mxu0 0.0
      %335 = vmatpush1.msra.mxu0 %v163
      %336 = vmatprep.subr.mxu0 0.0
      %337 = vmatpush1.msra.mxu0 %v164
      %338 = vmatprep.subr.mxu0 0.0
      %339 = vmatpush1.msra.mxu0 %v165
      %340 = vmatprep.subr.mxu0 0.0
      %341 = vmatpush1.msra.mxu0 %v166
      %342 = vmatprep.subr.mxu0 0.0
      %343 = vmatpush1.msra.mxu0 %v167
      %344 = vmatprep.subr.mxu0 0.0
      %345 = vmatpush1.msra.mxu0 %v168
      %346 = vmatprep.subr.mxu0 0.0
      %347 = vmatpush1.msra.mxu0 %v169
      %348 = vmatprep.subr.mxu0 0.0
      %349 = vmatpush1.msra.mxu0 %v170
      %350 = vmatprep.subr.mxu0 0.0
      %351 = vmatpush1.msra.mxu0 %v171
      %352 = vmatprep.subr.mxu0 0.0
      %353 = vmatpush1.msra.mxu0 %v172
      %354 = vmatprep.subr.mxu0 0.0
      %355 = vmatpush1.msra.mxu0 %v173
      %356 = vmatprep.subr.mxu0 0.0
      %357 = vmatpush1.msra.mxu0 %v174
      %358 = vmatprep.subr.mxu0 0.0
      %359 = vmatpush1.msra.mxu0 %v175
      %360 = vmatprep.subr.mxu0 0.0
      %361 = vmatpush1.msra.mxu0 %v176
      %362 = vmatprep.subr.mxu0 0.0
      %363 = vmatpush1.msra.mxu0 %v177
      %364 = vmatprep.subr.mxu0 0.0
      %365 = vmatpush1.msra.mxu0 %v178
      %366 = vmatprep.subr.mxu0 0.0
      %367 = vmatpush1.msra.mxu0 %v179
      %368 = vmatprep.subr.mxu0 0.0
      %369 = vmatpush1.msra.mxu0 %v180
      %370 = vmatprep.subr.mxu0 0.0
      %371 = vmatpush1.msra.mxu0 %v181
      %372 = vmatprep.subr.mxu0 0.0
      %373 = vmatpush1.msra.mxu0 %v182
      %374 = vmatprep.subr.mxu0 0.0
      %375 = vmatpush1.msra.mxu0 %v183
      %376 = vmatprep.subr.mxu0 0.0
      %377 = vmatpush1.msra.mxu0 %v184
      %378 = vmatprep.subr.mxu0 0.0
      %379 = vmatpush1.msra.mxu0 %v185
      %380 = vmatprep.subr.mxu0 0.0
      %381 = vmatpush1.msra.mxu0 0.0
      %382 = vmatprep.subr.mxu0 0.0
      %383 = vmatpush1.msra.mxu0 0.0
      %384 = vmatprep.subr.mxu0 0.0
      %385 = vmatpush1.msra.mxu0 0.0
      %386 = vmatprep.subr.mxu0 0.0
      %387 = vmatpush1.msra.mxu0 0.0
      %388 = vmatprep.subr.mxu0 0.0
      %389 = vmatpush1.msra.mxu0 0.0
      %390 = vmatprep.subr.mxu0 0.0
      %391 = vmatpush1.msra.mxu0 0.0
      %392 = vmatprep.subr.mxu0 0.0
      %393 = vmatpush1.msra.mxu0 0.0
      %394 = vmatprep.subr.mxu0 0.0
      %395 = vmatpush1.msra.mxu0 0.0
      %396 = vmatprep.mubr.f32.mxu0 %v321
      %397 = vmatmul.mubr.f32.gmra.mrb[0].mxu0 %v298
      %v398 = vpop.f32.mrb[0].mxu0
      %v399 = vadd.f32 0.0, %v398
      %v400 = vpop.f32.mrb[0].mxu0
      %401 = vmatprep.mubr.f32.mxu0 %v324
      %402 = vmatmul.mubr.f32.gmra.mrb[0].mxu0 %v304
      %v403 = vpop.f32.mrb[0].mxu0
      %v404 = vadd.f32 0.0, %v403
      %v405 = vpop.f32.mrb[0].mxu0
      %406 = vmatprep.mubr.f32.mxu0 %v327
      %407 = vmatmul.mubr.f32.gmra.mrb[0].mxu0 %v310
      %v408 = vpop.f32.mrb[0].mxu0
      %v409 = vadd.f32 0.0, %v408
      %v410 = vpop.f32.mrb[0].mxu0
      %411 = vmatprep.mubr.f32.mxu0 %v330
      %412 = vmatmul.mubr.f32.gmra.mrb[0].mxu0 %v316
      %v413 = vpop.f32.mrb[0].mxu0
      %v414 = vadd.f32 0.0, %v413
      %v415 = vpop.f32.mrb[0].mxu0
      %416 = vdwg.mxu0
      %vm417 = vcmask 785408
      %v419 = vsel %vm417, %v399, 0
      %v422 = vsel %vm417, %v404, 0
      %v425 = vsel %vm417, %v409, 0
      %v428 = vsel %vm417, %v414, 0
      %430 = vmatprep.subr.mxu0 %v195
      %431 = vmatpush1.msra.mxu0 %v194
      %432 = vmatprep.subr.mxu0 %v197
      %433 = vmatpush1.msra.mxu0 %v196
      %434 = vmatprep.subr.mxu0 %v199
      %435 = vmatpush1.msra.mxu0 %v198
      %436 = vmatprep.subr.mxu0 %v201
      %437 = vmatpush1.msra.mxu0 %v200
      %438 = vmatprep.subr.mxu0 %v203
      %439 = vmatpush1.msra.mxu0 %v202
      %440 = vmatprep.subr.mxu0 %v205
      %441 = vmatpush1.msra.mxu0 %v204
      %442 = vmatprep.subr.mxu0 %v207
      %443 = vmatpush1.msra.mxu0 %v206
      %444 = vmatprep.subr.mxu0 %v209
      %445 = vmatpush1.msra.mxu0 %v208
      %446 = vmatprep.subr.mxu0 %v211
      %447 = vmatpush1.msra.mxu0 %v210
      %448 = vmatprep.subr.mxu0 %v213
      %449 = vmatpush1.msra.mxu0 %v212
      %450 = vmatprep.subr.mxu0 %v215
      %451 = vmatpush1.msra.mxu0 %v214
      %452 = vmatprep.subr.mxu0 %v217
      %453 = vmatpush1.msra.mxu0 %v216
      %454 = vmatprep.subr.mxu0 0.0
      %455 = vmatpush1.msra.mxu0 0.0
      %456 = vmatprep.subr.mxu0 0.0
      %457 = vmatpush1.msra.mxu0 0.0
      %458 = vmatprep.subr.mxu0 0.0
      %459 = vmatpush1.msra.mxu0 0.0
      %460 = vmatprep.subr.mxu0 0.0
      %461 = vmatpush1.msra.mxu0 0.0
      %462 = vmatprep.subr.mxu0 0.0
      %463 = vmatpush1.msra.mxu0 0.0
      %464 = vmatprep.subr.mxu0 0.0
      %465 = vmatpush1.msra.mxu0 0.0
      %466 = vmatprep.subr.mxu0 0.0
      %467 = vmatpush1.msra.mxu0 0.0
      %468 = vmatprep.subr.mxu0 0.0
      %469 = vmatpush1.msra.mxu0 0.0
      %470 = vmatprep.subr.mxu0 0.0
      %471 = vmatpush1.msra.mxu0 0.0
      %472 = vmatprep.subr.mxu0 0.0
      %473 = vmatpush1.msra.mxu0 0.0
      %474 = vmatprep.subr.mxu0 0.0
      %475 = vmatpush1.msra.mxu0 0.0
      %476 = vmatprep.subr.mxu0 0.0
      %477 = vmatpush1.msra.mxu0 0.0
      %478 = vmatprep.subr.mxu0 0.0
      %479 = vmatpush1.msra.mxu0 0.0
      %480 = vmatprep.subr.mxu0 0.0
      %481 = vmatpush1.msra.mxu0 0.0
      %482 = vmatprep.subr.mxu0 0.0
      %483 = vmatpush1.msra.mxu0 0.0
      %484 = vmatprep.subr.mxu0 0.0
      %485 = vmatpush1.msra.mxu0 0.0
      %486 = vmatprep.subr.mxu0 0.0
      %487 = vmatpush1.msra.mxu0 0.0
      %488 = vmatprep.subr.mxu0 0.0
      %489 = vmatpush1.msra.mxu0 0.0
      %490 = vmatprep.subr.mxu0 0.0
      %491 = vmatpush1.msra.mxu0 0.0
      %492 = vmatprep.subr.mxu0 0.0
      %493 = vmatpush1.msra.mxu0 0.0
      %494 = vmatprep.mubr.f32.mxu0 0.0
      %495 = vmatmul.mubr.f32.gmra.mrb[0].mxu0 %v419
      %v496 = vpop.f32.mrb[0].mxu0
      %v497 = vadd.f32 0.0, %v496
      %v498 = vpop.f32.mrb[0].mxu0
      %v499 = vadd.f32 0.0, %v498
      %500 = vmatprep.mubr.f32.mxu0 0.0
      %501 = vmatmul.mubr.f32.gmra.mrb[0].mxu0 %v422
      %v502 = vpop.f32.mrb[0].mxu0
      %v503 = vadd.f32 0.0, %v502
      %v504 = vpop.f32.mrb[0].mxu0
      %v505 = vadd.f32 0.0, %v504
      %506 = vmatprep.mubr.f32.mxu0 0.0
      %507 = vmatmul.mubr.f32.gmra.mrb[0].mxu0 %v425
      %v508 = vpop.f32.mrb[0].mxu0
      %v509 = vadd.f32 0.0, %v508
      %v510 = vpop.f32.mrb[0].mxu0
      %v511 = vadd.f32 0.0, %v510
      %512 = vmatprep.mubr.f32.mxu0 0.0
      %513 = vmatmul.mubr.f32.gmra.mrb[0].mxu0 %v428
      %v514 = vpop.f32.mrb[0].mxu0
      %v515 = vadd.f32 0.0, %v514
      %v516 = vpop.f32.mrb[0].mxu0
      %v517 = vadd.f32 0.0, %v516
      %518 = vdwg.mxu0
      %vm519 = vcmask 261120
      %v521 = vsel %vm519, %v186, 0
      %v524 = vsel %vm519, %v187, 0
      %v527 = vsel %vm519, %v188, 0
      %v530 = vsel %vm519, %v189, 0
      %v533 = vsel %vm519, %v190, 0
      %v536 = vsel %vm519, %v191, 0
      %v539 = vsel %vm519, %v192, 0
      %v542 = vsel %vm519, %v193, 0
      %544 = vmatprep.subr.mxu0 %v499
      %545 = vmatpush1.msra.mxu0 %v497
      %546 = vmatprep.subr.mxu0 %v505
      %547 = vmatpush1.msra.mxu0 %v503
      %548 = vmatprep.subr.mxu0 %v511
      %549 = vmatpush1.msra.mxu0 %v509
      %550 = vmatprep.subr.mxu0 %v517
      %551 = vmatpush1.msra.mxu0 %v515
      %552 = vmatprep.subr.mxu0 0.0
      %553 = vmatpush1.msra.mxu0 0.0
      %554 = vmatprep.subr.mxu0 0.0
      %555 = vmatpush1.msra.mxu0 0.0
      %556 = vmatprep.subr.mxu0 0.0
      %557 = vmatpush1.msra.mxu0 0.0
      %558 = vmatprep.subr.mxu0 0.0
      %559 = vmatpush1.msra.mxu0 0.0
      %560 = vmatprep.subr.mxu0 0.0
      %561 = vmatpush1.msra.mxu0 0.0
      %562 = vmatprep.subr.mxu0 0.0
      %563 = vmatpush1.msra.mxu0 0.0
      %564 = vmatprep.subr.mxu0 0.0
      %565 = vmatpush1.msra.mxu0 0.0
      %566 = vmatprep.subr.mxu0 0.0
      %567 = vmatpush1.msra.mxu0 0.0
      %568 = vmatprep.subr.mxu0 0.0
      %569 = vmatpush1.msra.mxu0 0.0
      %570 = vmatprep.subr.mxu0 0.0
      %571 = vmatpush1.msra.mxu0 0.0
      %572 = vmatprep.subr.mxu0 0.0
      %573 = vmatpush1.msra.mxu0 0.0
      %574 = vmatprep.subr.mxu0 0.0
      %575 = vmatpush1.msra.mxu0 0.0
      %576 = vmatprep.subr.mxu0 0.0
      %577 = vmatpush1.msra.mxu0 0.0
      %578 = vmatprep.subr.mxu0 0.0
      %579 = vmatpush1.msra.mxu0 0.0
      %580 = vmatprep.subr.mxu0 0.0
      %581 = vmatpush1.msra.mxu0 0.0
      %582 = vmatprep.subr.mxu0 0.0
      %583 = vmatpush1.msra.mxu0 0.0
      %584 = vmatprep.subr.mxu0 0.0
      %585 = vmatpush1.msra.mxu0 0.0
      %586 = vmatprep.subr.mxu0 0.0
      %587 = vmatpush1.msra.mxu0 0.0
      %588 = vmatprep.subr.mxu0 0.0
      %589 = vmatpush1.msra.mxu0 0.0
      %590 = vmatprep.subr.mxu0 0.0
      %591 = vmatpush1.msra.mxu0 0.0
      %592 = vmatprep.subr.mxu0 0.0
      %593 = vmatpush1.msra.mxu0 0.0
      %594 = vmatprep.subr.mxu0 0.0
      %595 = vmatpush1.msra.mxu0 0.0
      %596 = vmatprep.subr.mxu0 0.0
      %597 = vmatpush1.msra.mxu0 0.0
      %598 = vmatprep.subr.mxu0 0.0
      %599 = vmatpush1.msra.mxu0 0.0
      %600 = vmatprep.subr.mxu0 0.0
      %601 = vmatpush1.msra.mxu0 0.0
      %602 = vmatprep.subr.mxu0 0.0
      %603 = vmatpush1.msra.mxu0 0.0
      %604 = vmatprep.subr.mxu0 0.0
      %605 = vmatpush1.msra.mxu0 0.0
      %606 = vmatprep.subr.mxu0 0.0
      %607 = vmatpush1.msra.mxu0 0.0
      %608 = vmatprep.mubr.f32.mxu0 0.0
      %609 = vmatmul.mubr.f32.gmra.mrb[0].mxu0 %v521
      %v610 = vpop.f32.mrb[0].mxu0
      %v611 = vadd.f32 0.0, %v610
      %v612 = vpop.f32.mrb[0].mxu0
      %v613 = vadd.f32 0.0, %v612
      %614 = vmatprep.mubr.f32.mxu0 0.0
      %615 = vmatmul.mubr.f32.gmra.mrb[0].mxu0 %v524
      %v616 = vpop.f32.mrb[0].mxu0
      %v617 = vadd.f32 0.0, %v616
      %v618 = vpop.f32.mrb[0].mxu0
      %v619 = vadd.f32 0.0, %v618
      %620 = vmatprep.mubr.f32.mxu0 0.0
      %621 = vmatmul.mubr.f32.gmra.mrb[0].mxu0 %v527
      %v622 = vpop.f32.mrb[0].mxu0
      %v623 = vadd.f32 0.0, %v622
      %v624 = vpop.f32.mrb[0].mxu0
      %v625 = vadd.f32 0.0, %v624
      %626 = vmatprep.mubr.f32.mxu0 0.0
      %627 = vmatmul.mubr.f32.gmra.mrb[0].mxu0 %v530
      %v628 = vpop.f32.mrb[0].mxu0
      %v629 = vadd.f32 0.0, %v628
      %v630 = vpop.f32.mrb[0].mxu0
      %v631 = vadd.f32 0.0, %v630
      %632 = vmatprep.mubr.f32.mxu0 0.0
      %633 = vmatmul.mubr.f32.gmra.mrb[0].mxu0 %v533
      %v634 = vpop.f32.mrb[0].mxu0
      %v635 = vadd.f32 0.0, %v634
      %v636 = vpop.f32.mrb[0].mxu0
      %v637 = vadd.f32 0.0, %v636
      %638 = vmatprep.mubr.f32.mxu0 0.0
      %639 = vmatmul.mubr.f32.gmra.mrb[0].mxu0 %v536
      %v640 = vpop.f32.mrb[0].mxu0
      %v641 = vadd.f32 0.0, %v640
      %v642 = vpop.f32.mrb[0].mxu0
      %v643 = vadd.f32 0.0, %v642
      %644 = vmatprep.mubr.f32.mxu0 0.0
      %645 = vmatmul.mubr.f32.gmra.mrb[0].mxu0 %v539
      %v646 = vpop.f32.mrb[0].mxu0
      %v647 = vadd.f32 0.0, %v646
      %v648 = vpop.f32.mrb[0].mxu0
      %v649 = vadd.f32 0.0, %v648
      %650 = vmatprep.mubr.f32.mxu0 0.0
      %651 = vmatmul.mubr.f32.gmra.mrb[0].mxu0 %v542
      %v652 = vpop.f32.mrb[0].mxu0
      %v653 = vadd.f32 0.0, %v652
      %v654 = vpop.f32.mrb[0].mxu0
      %v655 = vadd.f32 0.0, %v654
      %656 = vdwg.mxu0
      %v657 = vsub.f32 %v140, %v611
      %v658 = vsub.f32 %v141, %v613
      %v659 = vsub.f32 %v142, %v617
      %v660 = vsub.f32 %v143, %v619
      %v661 = vsub.f32 %v144, %v623
      %v662 = vsub.f32 %v145, %v625
      %v663 = vsub.f32 %v146, %v629
      %v664 = vsub.f32 %v147, %v631
      %v665 = vsub.f32 %v148, %v635
      %v666 = vsub.f32 %v149, %v637
      %v667 = vsub.f32 %v150, %v641
      %v668 = vsub.f32 %v151, %v643
      %v669 = vsub.f32 %v152, %v647
      %v670 = vsub.f32 %v153, %v649
      %v671 = vsub.f32 %v154, %v653
      %v672 = vsub.f32 %v155, %v655
      %v673 = vand.u32 2147483647, %v657
      %v674 = vand.u32 2147483647, %v658
      %v675 = vand.u32 2147483647, %v659
      %v676 = vand.u32 2147483647, %v660
      %v677 = vand.u32 2147483647, %v661
      %v678 = vand.u32 2147483647, %v662
      %v679 = vand.u32 2147483647, %v663
      %v680 = vand.u32 2147483647, %v664
      %v681 = vand.u32 2147483647, %v665
      %v682 = vand.u32 2147483647, %v666
      %v683 = vand.u32 2147483647, %v667
      %v684 = vand.u32 2147483647, %v668
      %v685 = vand.u32 2147483647, %v669
      %v686 = vand.u32 2147483647, %v670
      %v687 = vand.u32 2147483647, %v671
      %v688 = vand.u32 2147483647, %v672
      %v689 = vsel %vm218, %v674, 0.0
      %v690 = vadd.f32 %v673, %v689
      %v691 = vadd.f32 %v690, %v675
      %v692 = vsel %vm218, %v676, 0.0
      %v693 = vadd.f32 %v691, %v692
      %v694 = vadd.f32 %v693, %v677
      %v695 = vsel %vm218, %v678, 0.0
      %v696 = vadd.f32 %v694, %v695
      %v697 = vadd.f32 %v696, %v679
      %v698 = vsel %vm218, %v680, 0.0
      %v699 = vadd.f32 %v697, %v698
      %v700 = vadd.f32 %v699, %v681
      %v701 = vsel %vm218, %v682, 0.0
      %v702 = vadd.f32 %v700, %v701
      %v703 = vadd.f32 %v702, %v683
      %v704 = vsel %vm218, %v684, 0.0
      %v705 = vadd.f32 %v703, %v704
      %v706 = vadd.f32 %v705, %v685
      %v707 = vsel %vm218, %v686, 0.0
      %v708 = vadd.f32 %v706, %v707
      %v709 = vadd.f32 %v708, %v687
      %v710 = vsel %vm218, %v688, 0.0
      %v711 = vadd.f32 %v709, %v710
      %712 = vadd.xlane.f32.xlu0 %v711
      %v713 = vpop.xlane.xlu0 %712
      %v714 = vrot.slane %v713, 4
      %v715 = vadd.f32 %v713, %v714
      %v716 = vrot.slane %v715, 2
      %v717 = vadd.f32 %v715, %v716
      %v718 = vrot.slane %v717, 1
      %v719 = vadd.f32 %v717, %v718
      %s720 = vtos %v719
      %vm721 = vcmp.eq.s32.totalorder %v157, 0
      %v722 = vstv %s720
      %v723 = vsel %vm721, %v722, 0.0
      %v724 = vadd.f32 %v723, 0.0
      %v725 = vld [vmem:[%s1 + $0x300] sm:$0xff]
      %v726 = vld [vmem:[%s1 + $0x310] sm:$0xff]
      %v727 = vld [vmem:[%s1 + $0x320] sm:$0xff]
      %v728 = vld [vmem:[%s1 + $0x330] sm:$0xff]
      %v729 = vld [vmem:[%s1 + $0x340] sm:$0xff]
      %v730 = vld [vmem:[%s1 + $0x350] sm:$0xff]
      %v731 = vld [vmem:[%s1 + $0x360] sm:$0xff]
      %v732 = vld [vmem:[%s1 + $0x370] sm:$0xff]
      %v733 = vld [vmem:[%s1 + $0x380] sm:$0xff]
      %v734 = vld [vmem:[%s1 + $0x390] sm:$0xff]
      %v735 = vld [vmem:[%s1 + $0x3a0] sm:$0xff]
      %v736 = vld [vmem:[%s1 + $0x3b0] sm:$0xff]
      %v737 = vld [vmem:[%s1 + $0x3c0] sm:$0xff]
      %v738 = vld [vmem:[%s1 + $0x3d0] sm:$0xff]
      %v739 = vld [vmem:[%s1 + $0x3e0] sm:$0xff]
      %v740 = vld [vmem:[%s1 + $0x3f0] sm:$0xff]
      %v741 = vld [vmem:[%s1 + $0x400] sm:$0xff]
      %v742 = vld [vmem:[%s1 + $0x410] sm:$0xff]
      %v743 = vld [vmem:[%s1 + $0x420] sm:$0xff]
      %v744 = vld [vmem:[%s1 + $0x430] sm:$0xff]
      %v745 = vld [vmem:[%s1 + $0x440] sm:$0xff]
      %v746 = vld [vmem:[%s1 + $0x450] sm:$0xff]
      %v747 = vld [vmem:[%s1 + $0x460] sm:$0xff]
      %v748 = vld [vmem:[%s1 + $0x470] sm:$0xff]
      %v750 = vsel %vm519, %v725, 0
      %v753 = vsel %vm519, %v726, 0
      %755 = vmatprep.subr.mxu0 0.0
      %756 = vmatpush1.msra.mxu0 %v399
      %757 = vmatprep.subr.mxu0 0.0
      %758 = vmatpush1.msra.mxu0 %v404
      %759 = vmatprep.subr.mxu0 0.0
      %760 = vmatpush1.msra.mxu0 %v409
      %761 = vmatprep.subr.mxu0 0.0
      %762 = vmatpush1.msra.mxu0 %v414
      %763 = vmatprep.subr.mxu0 0.0
      %764 = vmatpush1.msra.mxu0 0.0
      %765 = vmatprep.subr.mxu0 0.0
      %766 = vmatpush1.msra.mxu0 0.0
      %767 = vmatprep.subr.mxu0 0.0
      %768 = vmatpush1.msra.mxu0 0.0
      %769 = vmatprep.subr.mxu0 0.0
      %770 = vmatpush1.msra.mxu0 0.0
      %771 = vmatprep.subr.mxu0 0.0
      %772 = vmatpush1.msra.mxu0 0.0
      %773 = vmatprep.subr.mxu0 0.0
      %774 = vmatpush1.msra.mxu0 0.0
      %775 = vmatprep.subr.mxu0 0.0
      %776 = vmatpush1.msra.mxu0 0.0
      %777 = vmatprep.subr.mxu0 0.0
      %778 = vmatpush1.msra.mxu0 0.0
      %779 = vmatprep.subr.mxu0 0.0
      %780 = vmatpush1.msra.mxu0 0.0
      %781 = vmatprep.subr.mxu0 0.0
      %782 = vmatpush1.msra.mxu0 0.0
      %783 = vmatprep.subr.mxu0 0.0
      %784 = vmatpush1.msra.mxu0 0.0
      %785 = vmatprep.subr.mxu0 0.0
      %786 = vmatpush1.msra.mxu0 0.0
      %787 = vmatprep.subr.mxu0 0.0
      %788 = vmatpush1.msra.mxu0 0.0
      %789 = vmatprep.subr.mxu0 0.0
      %790 = vmatpush1.msra.mxu0 0.0
      %791 = vmatprep.subr.mxu0 0.0
      %792 = vmatpush1.msra.mxu0 0.0
      %793 = vmatprep.subr.mxu0 0.0
      %794 = vmatpush1.msra.mxu0 0.0
      %795 = vmatprep.subr.mxu0 0.0
      %796 = vmatpush1.msra.mxu0 0.0
      %797 = vmatprep.subr.mxu0 0.0
      %798 = vmatpush1.msra.mxu0 0.0
      %799 = vmatprep.subr.mxu0 0.0
      %800 = vmatpush1.msra.mxu0 0.0
      %801 = vmatprep.subr.mxu0 0.0
      %802 = vmatpush1.msra.mxu0 0.0
      %803 = vmatprep.subr.mxu0 0.0
      %804 = vmatpush1.msra.mxu0 0.0
      %805 = vmatprep.subr.mxu0 0.0
      %806 = vmatpush1.msra.mxu0 0.0
      %807 = vmatprep.subr.mxu0 0.0
      %808 = vmatpush1.msra.mxu0 0.0
      %809 = vmatprep.subr.mxu0 0.0
      %810 = vmatpush1.msra.mxu0 0.0
      %811 = vmatprep.subr.mxu0 0.0
      %812 = vmatpush1.msra.mxu0 0.0
      %813 = vmatprep.subr.mxu0 0.0
      %814 = vmatpush1.msra.mxu0 0.0
      %815 = vmatprep.subr.mxu0 0.0
      %816 = vmatpush1.msra.mxu0 0.0
      %817 = vmatprep.subr.mxu0 0.0
      %818 = vmatpush1.msra.mxu0 0.0
      %819 = vmatprep.mubr.f32.mxu0 0.0
      %820 = vmatmul.mubr.f32.gmra.mrb[0].mxu0 %v750
      %v821 = vpop.f32.mrb[0].mxu0
      %v822 = vadd.f32 0.0, %v821
      %v823 = vpop.f32.mrb[0].mxu0
      %824 = vmatprep.mubr.f32.mxu0 0.0
      %825 = vmatmul.mubr.f32.gmra.mrb[0].mxu0 %v753
      %v826 = vpop.f32.mrb[0].mxu0
      %v827 = vadd.f32 0.0, %v826
      %v828 = vpop.f32.mrb[0].mxu0
      %829 = vdwg.mxu0
      %v831 = vsel %vm417, %v822, 0
      %v834 = vsel %vm417, %v827, 0
      %836 = vmatprep.subr.mxu0 0.0
      %837 = vmatpush1.msra.mxu0 %v727
      %838 = vmatprep.subr.mxu0 0.0
      %839 = vmatpush1.msra.mxu0 %v728
      %840 = vmatprep.subr.mxu0 0.0
      %841 = vmatpush1.msra.mxu0 %v729
      %842 = vmatprep.subr.mxu0 0.0
      %843 = vmatpush1.msra.mxu0 %v730
      %844 = vmatprep.subr.mxu0 0.0
      %845 = vmatpush1.msra.mxu0 %v731
      %846 = vmatprep.subr.mxu0 0.0
      %847 = vmatpush1.msra.mxu0 %v732
      %848 = vmatprep.subr.mxu0 0.0
      %849 = vmatpush1.msra.mxu0 %v733
      %850 = vmatprep.subr.mxu0 0.0
      %851 = vmatpush1.msra.mxu0 %v734
      %852 = vmatprep.subr.mxu0 0.0
      %853 = vmatpush1.msra.mxu0 %v735
      %854 = vmatprep.subr.mxu0 0.0
      %855 = vmatpush1.msra.mxu0 %v736
      %856 = vmatprep.subr.mxu0 0.0
      %857 = vmatpush1.msra.mxu0 %v737
      %858 = vmatprep.subr.mxu0 0.0
      %859 = vmatpush1.msra.mxu0 %v738
      %860 = vmatprep.subr.mxu0 0.0
      %861 = vmatpush1.msra.mxu0 0.0
      %862 = vmatprep.subr.mxu0 0.0
      %863 = vmatpush1.msra.mxu0 0.0
      %864 = vmatprep.subr.mxu0 0.0
      %865 = vmatpush1.msra.mxu0 0.0
      %866 = vmatprep.subr.mxu0 0.0
      %867 = vmatpush1.msra.mxu0 0.0
      %868 = vmatprep.subr.mxu0 0.0
      %869 = vmatpush1.msra.mxu0 0.0
      %870 = vmatprep.subr.mxu0 0.0
      %871 = vmatpush1.msra.mxu0 0.0
      %872 = vmatprep.subr.mxu0 0.0
      %873 = vmatpush1.msra.mxu0 0.0
      %874 = vmatprep.subr.mxu0 0.0
      %875 = vmatpush1.msra.mxu0 0.0
      %876 = vmatprep.subr.mxu0 0.0
      %877 = vmatpush1.msra.mxu0 0.0
      %878 = vmatprep.subr.mxu0 0.0
      %879 = vmatpush1.msra.mxu0 0.0
      %880 = vmatprep.subr.mxu0 0.0
      %881 = vmatpush1.msra.mxu0 0.0
      %882 = vmatprep.subr.mxu0 0.0
      %883 = vmatpush1.msra.mxu0 0.0
      %884 = vmatprep.subr.mxu0 0.0
      %885 = vmatpush1.msra.mxu0 0.0
      %886 = vmatprep.subr.mxu0 0.0
      %887 = vmatpush1.msra.mxu0 0.0
      %888 = vmatprep.subr.mxu0 0.0
      %889 = vmatpush1.msra.mxu0 0.0
      %890 = vmatprep.subr.mxu0 0.0
      %891 = vmatpush1.msra.mxu0 0.0
      %892 = vmatprep.subr.mxu0 0.0
      %893 = vmatpush1.msra.mxu0 0.0
      %894 = vmatprep.subr.mxu0 0.0
      %895 = vmatpush1.msra.mxu0 0.0
      %896 = vmatprep.subr.mxu0 0.0
      %897 = vmatpush1.msra.mxu0 0.0
      %898 = vmatprep.subr.mxu0 0.0
      %899 = vmatpush1.msra.mxu0 0.0
      %900 = vmatprep.mubr.f32.mxu0 0.0
      %901 = vmatmul.mubr.f32.gmra.mrb[0].mxu0 %v831
      %v902 = vpop.f32.mrb[0].mxu0
      %v903 = vadd.f32 0.0, %v902
      %v904 = vpop.f32.mrb[0].mxu0
      %905 = vmatprep.mubr.f32.mxu0 0.0
      %906 = vmatmul.mubr.f32.gmra.mrb[0].mxu0 %v834
      %v907 = vpop.f32.mrb[0].mxu0
      %v908 = vadd.f32 0.0, %v907
      %v909 = vpop.f32.mrb[0].mxu0
      %910 = vdwg.mxu0
      %vm911 = vcmask 392192
      %v913 = vsel %vm911, %v903, 0
      %v916 = vsel %vm911, %v908, 0
      %918 = vmatprep.subr.mxu0 0.0
      %919 = vmatpush1.msra.mxu0 %v743
      %920 = vmatprep.subr.mxu0 0.0
      %921 = vmatpush1.msra.mxu0 %v744
      %922 = vmatprep.subr.mxu0 0.0
      %923 = vmatpush1.msra.mxu0 %v745
      %924 = vmatprep.subr.mxu0 0.0
      %925 = vmatpush1.msra.mxu0 %v746
      %926 = vmatprep.subr.mxu0 0.0
      %927 = vmatpush1.msra.mxu0 %v747
      %928 = vmatprep.subr.mxu0 0.0
      %929 = vmatpush1.msra.mxu0 %v748
      %930 = vmatprep.subr.mxu0 0.0
      %931 = vmatpush1.msra.mxu0 0.0
      %932 = vmatprep.subr.mxu0 0.0
      %933 = vmatpush1.msra.mxu0 0.0
      %934 = vmatprep.subr.mxu0 0.0
      %935 = vmatpush1.msra.mxu0 0.0
      %936 = vmatprep.subr.mxu0 0.0
      %937 = vmatpush1.msra.mxu0 0.0
      %938 = vmatprep.subr.mxu0 0.0
      %939 = vmatpush1.msra.mxu0 0.0
      %940 = vmatprep.subr.mxu0 0.0
      %941 = vmatpush1.msra.mxu0 0.0
      %942 = vmatprep.subr.mxu0 0.0
      %943 = vmatpush1.msra.mxu0 0.0
      %944 = vmatprep.subr.mxu0 0.0
      %945 = vmatpush1.msra.mxu0 0.0
      %946 = vmatprep.subr.mxu0 0.0
      %947 = vmatpush1.msra.mxu0 0.0
      %948 = vmatprep.subr.mxu0 0.0
      %949 = vmatpush1.msra.mxu0 0.0
      %950 = vmatprep.subr.mxu0 0.0
      %951 = vmatpush1.msra.mxu0 0.0
      %952 = vmatprep.subr.mxu0 0.0
      %953 = vmatpush1.msra.mxu0 0.0
      %954 = vmatprep.subr.mxu0 0.0
      %955 = vmatpush1.msra.mxu0 0.0
      %956 = vmatprep.subr.mxu0 0.0
      %957 = vmatpush1.msra.mxu0 0.0
      %958 = vmatprep.subr.mxu0 0.0
      %959 = vmatpush1.msra.mxu0 0.0
      %960 = vmatprep.subr.mxu0 0.0
      %961 = vmatpush1.msra.mxu0 0.0
      %962 = vmatprep.subr.mxu0 0.0
      %963 = vmatpush1.msra.mxu0 0.0
      %964 = vmatprep.subr.mxu0 0.0
      %965 = vmatpush1.msra.mxu0 0.0
      %966 = vmatprep.subr.mxu0 0.0
      %967 = vmatpush1.msra.mxu0 0.0
      %968 = vmatprep.subr.mxu0 0.0
      %969 = vmatpush1.msra.mxu0 0.0
      %970 = vmatprep.subr.mxu0 0.0
      %971 = vmatpush1.msra.mxu0 0.0
      %972 = vmatprep.subr.mxu0 0.0
      %973 = vmatpush1.msra.mxu0 0.0
      %974 = vmatprep.subr.mxu0 0.0
      %975 = vmatpush1.msra.mxu0 0.0
      %976 = vmatprep.subr.mxu0 0.0
      %977 = vmatpush1.msra.mxu0 0.0
      %978 = vmatprep.subr.mxu0 0.0
      %979 = vmatpush1.msra.mxu0 0.0
      %980 = vmatprep.subr.mxu0 0.0
      %981 = vmatpush1.msra.mxu0 0.0
      %982 = vmatprep.mubr.f32.mxu0 0.0
      %983 = vmatmul.mubr.f32.gmra.mrb[0].mxu0 %v913
      %v984 = vpop.f32.mrb[0].mxu0
      %v985 = vadd.f32 0.0, %v984
      %v986 = vpop.f32.mrb[0].mxu0
      %987 = vmatprep.mubr.f32.mxu0 0.0
      %988 = vmatmul.mubr.f32.gmra.mrb[0].mxu0 %v916
      %v989 = vpop.f32.mrb[0].mxu0
      %v990 = vadd.f32 0.0, %v989
      %v991 = vpop.f32.mrb[0].mxu0
      %992 = vdwg.mxu0
      %vm993 = vcmask 130048
      %v995 = vsel %vm993, %v739, 0
      %v998 = vsel %vm993, %v740, 0
      %v1001 = vsel %vm993, %v741, 0
      %v1004 = vsel %vm993, %v742, 0
      %1006 = vmatprep.subr.mxu0 0.0
      %1007 = vmatpush1.msra.mxu0 %v985
      %1008 = vmatprep.subr.mxu0 0.0
      %1009 = vmatpush1.msra.mxu0 %v990
      %1010 = vmatprep.subr.mxu0 0.0
      %1011 = vmatpush1.msra.mxu0 0.0
      %1012 = vmatprep.subr.mxu0 0.0
      %1013 = vmatpush1.msra.mxu0 0.0
      %1014 = vmatprep.subr.mxu0 0.0
      %1015 = vmatpush1.msra.mxu0 0.0
      %1016 = vmatprep.subr.mxu0 0.0
      %1017 = vmatpush1.msra.mxu0 0.0
      %1018 = vmatprep.subr.mxu0 0.0
      %1019 = vmatpush1.msra.mxu0 0.0
      %1020 = vmatprep.subr.mxu0 0.0
      %1021 = vmatpush1.msra.mxu0 0.0
      %1022 = vmatprep.subr.mxu0 0.0
      %1023 = vmatpush1.msra.mxu0 0.0
      %1024 = vmatprep.subr.mxu0 0.0
      %1025 = vmatpush1.msra.mxu0 0.0
      %1026 = vmatprep.subr.mxu0 0.0
      %1027 = vmatpush1.msra.mxu0 0.0
      %1028 = vmatprep.subr.mxu0 0.0
      %1029 = vmatpush1.msra.mxu0 0.0
      %1030 = vmatprep.subr.mxu0 0.0
      %1031 = vmatpush1.msra.mxu0 0.0
      %1032 = vmatprep.subr.mxu0 0.0
      %1033 = vmatpush1.msra.mxu0 0.0
      %1034 = vmatprep.subr.mxu0 0.0
      %1035 = vmatpush1.msra.mxu0 0.0
      %1036 = vmatprep.subr.mxu0 0.0
      %1037 = vmatpush1.msra.mxu0 0.0
      %1038 = vmatprep.subr.mxu0 0.0
      %1039 = vmatpush1.msra.mxu0 0.0
      %1040 = vmatprep.subr.mxu0 0.0
      %1041 = vmatpush1.msra.mxu0 0.0
      %1042 = vmatprep.subr.mxu0 0.0
      %1043 = vmatpush1.msra.mxu0 0.0
      %1044 = vmatprep.subr.mxu0 0.0
      %1045 = vmatpush1.msra.mxu0 0.0
      %1046 = vmatprep.subr.mxu0 0.0
      %1047 = vmatpush1.msra.mxu0 0.0
      %1048 = vmatprep.subr.mxu0 0.0
      %1049 = vmatpush1.msra.mxu0 0.0
      %1050 = vmatprep.subr.mxu0 0.0
      %1051 = vmatpush1.msra.mxu0 0.0
      %1052 = vmatprep.subr.mxu0 0.0
      %1053 = vmatpush1.msra.mxu0 0.0
      %1054 = vmatprep.subr.mxu0 0.0
      %1055 = vmatpush1.msra.mxu0 0.0
      %1056 = vmatprep.subr.mxu0 0.0
      %1057 = vmatpush1.msra.mxu0 0.0
      %1058 = vmatprep.subr.mxu0 0.0
      %1059 = vmatpush1.msra.mxu0 0.0
      %1060 = vmatprep.subr.mxu0 0.0
      %1061 = vmatpush1.msra.mxu0 0.0
      %1062 = vmatprep.subr.mxu0 0.0
      %1063 = vmatpush1.msra.mxu0 0.0
      %1064 = vmatprep.subr.mxu0 0.0
      %1065 = vmatpush1.msra.mxu0 0.0
      %1066 = vmatprep.subr.mxu0 0.0
      %1067 = vmatpush1.msra.mxu0 0.0
      %1068 = vmatprep.subr.mxu0 0.0
      %1069 = vmatpush1.msra.mxu0 0.0
      %1070 = vmatprep.mubr.f32.mxu0 0.0
      %1071 = vmatmul.mubr.f32.gmra.mrb[0].mxu0 %v995
      %v1072 = vpop.f32.mrb[0].mxu0
      %v1073 = vadd.f32 0.0, %v1072
      %v1074 = vpop.f32.mrb[0].mxu0
      %1075 = vmatprep.mubr.f32.mxu0 0.0
      %1076 = vmatmul.mubr.f32.gmra.mrb[0].mxu0 %v998
      %v1077 = vpop.f32.mrb[0].mxu0
      %v1078 = vadd.f32 0.0, %v1077
      %v1079 = vpop.f32.mrb[0].mxu0
      %1080 = vmatprep.mubr.f32.mxu0 0.0
      %1081 = vmatmul.mubr.f32.gmra.mrb[0].mxu0 %v1001
      %v1082 = vpop.f32.mrb[0].mxu0
      %v1083 = vadd.f32 0.0, %v1082
      %v1084 = vpop.f32.mrb[0].mxu0
      %1085 = vmatprep.mubr.f32.mxu0 0.0
      %1086 = vmatmul.mubr.f32.gmra.mrb[0].mxu0 %v1004
      %v1087 = vpop.f32.mrb[0].mxu0
      %v1088 = vadd.f32 0.0, %v1087
      %v1089 = vpop.f32.mrb[0].mxu0
      %1090 = vdwg.mxu0
      %v1091 = vsub.f32 %v399, %v1073
      %v1092 = vsub.f32 %v404, %v1078
      %v1093 = vsub.f32 %v409, %v1083
      %v1094 = vsub.f32 %v414, %v1088
      %v1095 = vand.u32 2147483647, %v1091
      %v1096 = vand.u32 2147483647, %v1092
      %v1097 = vand.u32 2147483647, %v1093
      %v1098 = vand.u32 2147483647, %v1094
      %v1099 = vsel %vm417, %v1095, 0.0
      %v1100 = vsel %vm417, %v1096, 0.0
      %v1101 = vadd.f32 %v1099, %v1100
      %v1102 = vsel %vm417, %v1097, 0.0
      %v1103 = vadd.f32 %v1101, %v1102
      %v1104 = vsel %vm417, %v1098, 0.0
      %v1105 = vadd.f32 %v1103, %v1104
      %1106 = vadd.xlane.f32.xlu0 %v1105
      %v1107 = vpop.xlane.xlu0 %1106
      %v1108 = vrot.slane %v1107, 4
      %v1109 = vadd.f32 %v1107, %v1108
      %v1110 = vrot.slane %v1109, 2
      %v1111 = vadd.f32 %v1109, %v1110
      %v1112 = vrot.slane %v1111, 1
      %v1113 = vadd.f32 %v1111, %v1112
      %s1114 = vtos %v1113
      %vm1115 = vcmp.eq.s32.totalorder %v157, 1
      %v1116 = vstv %s1114
      %v1117 = vsel %vm1115, %v1116, 0.0
      %v1118 = vadd.f32 %v724, %v1117
      %v1119 = vld [vmem:[%s1 + $0x480] sm:$0xff]
      %v1120 = vld [vmem:[%s1 + $0x490] sm:$0xff]
      %v1121 = vld [vmem:[%s1 + $0x4a0] sm:$0xff]
      %v1122 = vld [vmem:[%s1 + $0x4b0] sm:$0xff]
      %v1123 = vld [vmem:[%s1 + $0x4c0] sm:$0xff]
      %v1124 = vld [vmem:[%s1 + $0x4d0] sm:$0xff]
      %v1125 = vld [vmem:[%s1 + $0x4e0] sm:$0xff]
      %v1126 = vld [vmem:[%s1 + $0x4f0] sm:$0xff]
      %v1127 = vld [vmem:[%s1 + $0x500] sm:$0xff]
      %v1128 = vld [vmem:[%s1 + $0x510] sm:$0xff]
      %v1129 = vld [vmem:[%s1 + $0x520] sm:$0xff]
      %v1130 = vld [vmem:[%s1 + $0x530] sm:$0xff]
      %v1132 = vsel %vm993, %v1119, 0
      %1134 = vmatprep.subr.mxu0 0.0
      %1135 = vmatpush1.msra.mxu0 %v903
      %1136 = vmatprep.subr.mxu0 0.0
      %1137 = vmatpush1.msra.mxu0 %v908
      %1138 = vmatprep.subr.mxu0 0.0
      %1139 = vmatpush1.msra.mxu0 0.0
      %1140 = vmatprep.subr.mxu0 0.0
      %1141 = vmatpush1.msra.mxu0 0.0
      %1142 = vmatprep.subr.mxu0 0.0
      %1143 = vmatpush1.msra.mxu0 0.0
      %1144 = vmatprep.subr.mxu0 0.0
      %1145 = vmatpush1.msra.mxu0 0.0
      %1146 = vmatprep.subr.mxu0 0.0
      %1147 = vmatpush1.msra.mxu0 0.0
      %1148 = vmatprep.subr.mxu0 0.0
      %1149 = vmatpush1.msra.mxu0 0.0
      %1150 = vmatprep.subr.mxu0 0.0
      %1151 = vmatpush1.msra.mxu0 0.0
      %1152 = vmatprep.subr.mxu0 0.0
      %1153 = vmatpush1.msra.mxu0 0.0
      %1154 = vmatprep.subr.mxu0 0.0
      %1155 = vmatpush1.msra.mxu0 0.0
      %1156 = vmatprep.subr.mxu0 0.0
      %1157 = vmatpush1.msra.mxu0 0.0
      %1158 = vmatprep.subr.mxu0 0.0
      %1159 = vmatpush1.msra.mxu0 0.0
      %1160 = vmatprep.subr.mxu0 0.0
      %1161 = vmatpush1.msra.mxu0 0.0
      %1162 = vmatprep.subr.mxu0 0.0
      %1163 = vmatpush1.msra.mxu0 0.0
      %1164 = vmatprep.subr.mxu0 0.0
      %1165 = vmatpush1.msra.mxu0 0.0
      %1166 = vmatprep.subr.mxu0 0.0
      %1167 = vmatpush1.msra.mxu0 0.0
      %1168 = vmatprep.subr.mxu0 0.0
      %1169 = vmatpush1.msra.mxu0 0.0
      %1170 = vmatprep.subr.mxu0 0.0
      %1171 = vmatpush1.msra.mxu0 0.0
      %1172 = vmatprep.subr.mxu0 0.0
      %1173 = vmatpush1.msra.mxu0 0.0
      %1174 = vmatprep.subr.mxu0 0.0
      %1175 = vmatpush1.msra.mxu0 0.0
      %1176 = vmatprep.subr.mxu0 0.0
      %1177 = vmatpush1.msra.mxu0 0.0
      %1178 = vmatprep.subr.mxu0 0.0
      %1179 = vmatpush1.msra.mxu0 0.0
      %1180 = vmatprep.subr.mxu0 0.0
      %1181 = vmatpush1.msra.mxu0 0.0
      %1182 = vmatprep.subr.mxu0 0.0
      %1183 = vmatpush1.msra.mxu0 0.0
      %1184 = vmatprep.subr.mxu0 0.0
      %1185 = vmatpush1.msra.mxu0 0.0
      %1186 = vmatprep.subr.mxu0 0.0
      %1187 = vmatpush1.msra.mxu0 0.0
      %1188 = vmatprep.subr.mxu0 0.0
      %1189 = vmatpush1.msra.mxu0 0.0
      %1190 = vmatprep.subr.mxu0 0.0
      %1191 = vmatpush1.msra.mxu0 0.0
      %1192 = vmatprep.subr.mxu0 0.0
      %1193 = vmatpush1.msra.mxu0 0.0
      %1194 = vmatprep.subr.mxu0 0.0
      %1195 = vmatpush1.msra.mxu0 0.0
      %1196 = vmatprep.subr.mxu0 0.0
      %1197 = vmatpush1.msra.mxu0 0.0
      %1198 = vmatprep.mubr.f32.mxu0 0.0
      %1199 = vmatmul.mubr.f32.gmra.mrb[0].mxu0 %v1132
      %v1200 = vpop.f32.mrb[0].mxu0
      %v1201 = vadd.f32 0.0, %v1200
      %v1202 = vpop.f32.mrb[0].mxu0
      %1203 = vdwg.mxu0
      %v1205 = vsel %vm911, %v1201, 0
      %1207 = vmatprep.subr.mxu0 0.0
      %1208 = vmatpush1.msra.mxu0 %v1120
      %1209 = vmatprep.subr.mxu0 0.0
      %1210 = vmatpush1.msra.mxu0 %v1121
      %1211 = vmatprep.subr.mxu0 0.0
      %1212 = vmatpush1.msra.mxu0 %v1122
      %1213 = vmatprep.subr.mxu0 0.0
      %1214 = vmatpush1.msra.mxu0 %v1123
      %1215 = vmatprep.subr.mxu0 0.0
      %1216 = vmatpush1.msra.mxu0 %v1124
      %1217 = vmatprep.subr.mxu0 0.0
      %1218 = vmatpush1.msra.mxu0 %v1125
      %1219 = vmatprep.subr.mxu0 0.0
      %1220 = vmatpush1.msra.mxu0 0.0
      %1221 = vmatprep.subr.mxu0 0.0
      %1222 = vmatpush1.msra.mxu0 0.0
      %1223 = vmatprep.subr.mxu0 0.0
      %1224 = vmatpush1.msra.mxu0 0.0
      %1225 = vmatprep.subr.mxu0 0.0
      %1226 = vmatpush1.msra.mxu0 0.0
      %1227 = vmatprep.subr.mxu0 0.0
      %1228 = vmatpush1.msra.mxu0 0.0
      %1229 = vmatprep.subr.mxu0 0.0
      %1230 = vmatpush1.msra.mxu0 0.0
      %1231 = vmatprep.subr.mxu0 0.0
      %1232 = vmatpush1.msra.mxu0 0.0
      %1233 = vmatprep.subr.mxu0 0.0
      %1234 = vmatpush1.msra.mxu0 0.0
      %1235 = vmatprep.subr.mxu0 0.0
      %1236 = vmatpush1.msra.mxu0 0.0
      %1237 = vmatprep.subr.mxu0 0.0
      %1238 = vmatpush1.msra.mxu0 0.0
      %1239 = vmatprep.subr.mxu0 0.0
      %1240 = vmatpush1.msra.mxu0 0.0
      %1241 = vmatprep.subr.mxu0 0.0
      %1242 = vmatpush1.msra.mxu0 0.0
      %1243 = vmatprep.subr.mxu0 0.0
      %1244 = vmatpush1.msra.mxu0 0.0
      %1245 = vmatprep.subr.mxu0 0.0
      %1246 = vmatpush1.msra.mxu0 0.0
      %1247 = vmatprep.subr.mxu0 0.0
      %1248 = vmatpush1.msra.mxu0 0.0
      %1249 = vmatprep.subr.mxu0 0.0
      %1250 = vmatpush1.msra.mxu0 0.0
      %1251 = vmatprep.subr.mxu0 0.0
      %1252 = vmatpush1.msra.mxu0 0.0
      %1253 = vmatprep.subr.mxu0 0.0
      %1254 = vmatpush1.msra.mxu0 0.0
      %1255 = vmatprep.subr.mxu0 0.0
      %1256 = vmatpush1.msra.mxu0 0.0
      %1257 = vmatprep.subr.mxu0 0.0
      %1258 = vmatpush1.msra.mxu0 0.0
      %1259 = vmatprep.subr.mxu0 0.0
      %1260 = vmatpush1.msra.mxu0 0.0
      %1261 = vmatprep.subr.mxu0 0.0
      %1262 = vmatpush1.msra.mxu0 0.0
      %1263 = vmatprep.subr.mxu0 0.0
      %1264 = vmatpush1.msra.mxu0 0.0
      %1265 = vmatprep.subr.mxu0 0.0
      %1266 = vmatpush1.msra.mxu0 0.0
      %1267 = vmatprep.subr.mxu0 0.0
      %1268 = vmatpush1.msra.mxu0 0.0
      %1269 = vmatprep.subr.mxu0 0.0
      %1270 = vmatpush1.msra.mxu0 0.0
      %1271 = vmatprep.mubr.f32.mxu0 0.0
      %1272 = vmatmul.mubr.f32.gmra.mrb[0].mxu0 %v1205
      %v1273 = vpop.f32.mrb[0].mxu0
      %v1274 = vadd.f32 0.0, %v1273
      %v1275 = vpop.f32.mrb[0].mxu0
      %1276 = vdwg.mxu0
      %vm1277 = vcmask 195584
      %v1279 = vsel %vm1277, %v1274, 0
      %1281 = vmatprep.subr.mxu0 0.0
      %1282 = vmatpush1.msra.mxu0 %v1128
      %1283 = vmatprep.subr.mxu0 0.0
      %1284 = vmatpush1.msra.mxu0 %v1129
      %1285 = vmatprep.subr.mxu0 0.0
      %1286 = vmatpush1.msra.mxu0 %v1130
      %1287 = vmatprep.subr.mxu0 0.0
      %1288 = vmatpush1.msra.mxu0 0.0
      %1289 = vmatprep.subr.mxu0 0.0
      %1290 = vmatpush1.msra.mxu0 0.0
      %1291 = vmatprep.subr.mxu0 0.0
      %1292 = vmatpush1.msra.mxu0 0.0
      %1293 = vmatprep.subr.mxu0 0.0
      %1294 = vmatpush1.msra.mxu0 0.0
      %1295 = vmatprep.subr.mxu0 0.0
      %1296 = vmatpush1.msra.mxu0 0.0
      %1297 = vmatprep.subr.mxu0 0.0
      %1298 = vmatpush1.msra.mxu0 0.0
      %1299 = vmatprep.subr.mxu0 0.0
      %1300 = vmatpush1.msra.mxu0 0.0
      %1301 = vmatprep.subr.mxu0 0.0
      %1302 = vmatpush1.msra.mxu0 0.0
      %1303 = vmatprep.subr.mxu0 0.0
      %1304 = vmatpush1.msra.mxu0 0.0
      %1305 = vmatprep.subr.mxu0 0.0
      %1306 = vmatpush1.msra.mxu0 0.0
      %1307 = vmatprep.subr.mxu0 0.0
      %1308 = vmatpush1.msra.mxu0 0.0
      %1309 = vmatprep.subr.mxu0 0.0
      %1310 = vmatpush1.msra.mxu0 0.0
      %1311 = vmatprep.subr.mxu0 0.0
      %1312 = vmatpush1.msra.mxu0 0.0
      %1313 = vmatprep.subr.mxu0 0.0
      %1314 = vmatpush1.msra.mxu0 0.0
      %1315 = vmatprep.subr.mxu0 0.0
      %1316 = vmatpush1.msra.mxu0 0.0
      %1317 = vmatprep.subr.mxu0 0.0
      %1318 = vmatpush1.msra.mxu0 0.0
      %1319 = vmatprep.subr.mxu0 0.0
      %1320 = vmatpush1.msra.mxu0 0.0
      %1321 = vmatprep.subr.mxu0 0.0
      %1322 = vmatpush1.msra.mxu0 0.0
      %1323 = vmatprep.subr.mxu0 0.0
      %1324 = vmatpush1.msra.mxu0 0.0
      %1325 = vmatprep.subr.mxu0 0.0
      %1326 = vmatpush1.msra.mxu0 0.0
      %1327 = vmatprep.subr.mxu0 0.0
      %1328 = vmatpush1.msra.mxu0 0.0
      %1329 = vmatprep.subr.mxu0 0.0
      %1330 = vmatpush1.msra.mxu0 0.0
      %1331 = vmatprep.subr.mxu0 0.0
      %1332 = vmatpush1.msra.mxu0 0.0
      %1333 = vmatprep.subr.mxu0 0.0
      %1334 = vmatpush1.msra.mxu0 0.0
      %1335 = vmatprep.subr.mxu0 0.0
      %1336 = vmatpush1.msra.mxu0 0.0
      %1337 = vmatprep.subr.mxu0 0.0
      %1338 = vmatpush1.msra.mxu0 0.0
      %1339 = vmatprep.subr.mxu0 0.0
      %1340 = vmatpush1.msra.mxu0 0.0
      %1341 = vmatprep.subr.mxu0 0.0
      %1342 = vmatpush1.msra.mxu0 0.0
      %1343 = vmatprep.subr.mxu0 0.0
      %1344 = vmatpush1.msra.mxu0 0.0
      %1345 = vmatprep.mubr.f32.mxu0 0.0
      %1346 = vmatmul.mubr.f32.gmra.mrb[0].mxu0 %v1279
      %v1347 = vpop.f32.mrb[0].mxu0
      %v1348 = vadd.f32 0.0, %v1347
      %v1349 = vpop.f32.mrb[0].mxu0
      %1350 = vdwg.mxu0
      %vm1351 = vcmask 64512
      %v1353 = vsel %vm1351, %v1126, 0
      %v1356 = vsel %vm1351, %v1127, 0
      %1358 = vmatprep.subr.mxu0 0.0
      %1359 = vmatpush1.msra.mxu0 %v1348
      %1360 = vmatprep.subr.mxu0 0.0
      %1361 = vmatpush1.msra.mxu0 0.0
      %1362 = vmatprep.subr.mxu0 0.0
      %1363 = vmatpush1.msra.mxu0 0.0
      %1364 = vmatprep.subr.mxu0 0.0
      %1365 = vmatpush1.msra.mxu0 0.0
      %1366 = vmatprep.subr.mxu0 0.0
      %1367 = vmatpush1.msra.mxu0 0.0
      %1368 = vmatprep.subr.mxu0 0.0
      %1369 = vmatpush1.msra.mxu0 0.0
      %1370 = vmatprep.subr.mxu0 0.0
      %1371 = vmatpush1.msra.mxu0 0.0
      %1372 = vmatprep.subr.mxu0 0.0
      %1373 = vmatpush1.msra.mxu0 0.0
      %1374 = vmatprep.subr.mxu0 0.0
      %1375 = vmatpush1.msra.mxu0 0.0
      %1376 = vmatprep.subr.mxu0 0.0
      %1377 = vmatpush1.msra.mxu0 0.0
      %1378 = vmatprep.subr.mxu0 0.0
      %1379 = vmatpush1.msra.mxu0 0.0
      %1380 = vmatprep.subr.mxu0 0.0
      %1381 = vmatpush1.msra.mxu0 0.0
      %1382 = vmatprep.subr.mxu0 0.0
      %1383 = vmatpush1.msra.mxu0 0.0
      %1384 = vmatprep.subr.mxu0 0.0
      %1385 = vmatpush1.msra.mxu0 0.0
      %1386 = vmatprep.subr.mxu0 0.0
      %1387 = vmatpush1.msra.mxu0 0.0
      %1388 = vmatprep.subr.mxu0 0.0
      %1389 = vmatpush1.msra.mxu0 0.0
      %1390 = vmatprep.subr.mxu0 0.0
      %1391 = vmatpush1.msra.mxu0 0.0
      %1392 = vmatprep.subr.mxu0 0.0
      %1393 = vmatpush1.msra.mxu0 0.0
      %1394 = vmatprep.subr.mxu0 0.0
      %1395 = vmatpush1.msra.mxu0 0.0
      %1396 = vmatprep.subr.mxu0 0.0
      %1397 = vmatpush1.msra.mxu0 0.0
      %1398 = vmatprep.subr.mxu0 0.0
      %1399 = vmatpush1.msra.mxu0 0.0
      %1400 = vmatprep.subr.mxu0 0.0
      %1401 = vmatpush1.msra.mxu0 0.0
      %1402 = vmatprep.subr.mxu0 0.0
      %1403 = vmatpush1.msra.mxu0 0.0
      %1404 = vmatprep.subr.mxu0 0.0
      %1405 = vmatpush1.msra.mxu0 0.0
      %1406 = vmatprep.subr.mxu0 0.0
      %1407 = vmatpush1.msra.mxu0 0.0
      %1408 = vmatprep.subr.mxu0 0.0
      %1409 = vmatpush1.msra.mxu0 0.0
      %1410 = vmatprep.subr.mxu0 0.0
      %1411 = vmatpush1.msra.mxu0 0.0
      %1412 = vmatprep.subr.mxu0 0.0
      %1413 = vmatpush1.msra.mxu0 0.0
      %1414 = vmatprep.subr.mxu0 0.0
      %1415 = vmatpush1.msra.mxu0 0.0
      %1416 = vmatprep.subr.mxu0 0.0
      %1417 = vmatpush1.msra.mxu0 0.0
      %1418 = vmatprep.subr.mxu0 0.0
      %1419 = vmatpush1.msra.mxu0 0.0
      %1420 = vmatprep.subr.mxu0 0.0
      %1421 = vmatpush1.msra.mxu0 0.0
      %1422 = vmatprep.mubr.f32.mxu0 0.0
      %1423 = vmatmul.mubr.f32.gmra.mrb[0].mxu0 %v1353
      %v1424 = vpop.f32.mrb[0].mxu0
      %v1425 = vadd.f32 0.0, %v1424
      %v1426 = vpop.f32.mrb[0].mxu0
      %1427 = vmatprep.mubr.f32.mxu0 0.0
      %1428 = vmatmul.mubr.f32.gmra.mrb[0].mxu0 %v1356
      %v1429 = vpop.f32.mrb[0].mxu0
      %v1430 = vadd.f32 0.0, %v1429
      %v1431 = vpop.f32.mrb[0].mxu0
      %1432 = vdwg.mxu0
      %v1433 = vsub.f32 %v903, %v1425
      %v1434 = vsub.f32 %v908, %v1430
      %v1435 = vand.u32 2147483647, %v1433
      %v1436 = vand.u32 2147483647, %v1434
      %v1437 = vsel %vm911, %v1435, 0.0
      %v1438 = vsel %vm911, %v1436, 0.0
      %v1439 = vadd.f32 %v1437, %v1438
      %1440 = vadd.xlane.f32.xlu0 %v1439
      %v1441 = vpop.xlane.xlu0 %1440
      %v1442 = vrot.slane %v1441, 4
      %v1443 = vadd.f32 %v1441, %v1442
      %v1444 = vrot.slane %v1443, 2
      %v1445 = vadd.f32 %v1443, %v1444
      %v1446 = vrot.slane %v1445, 1
      %v1447 = vadd.f32 %v1445, %v1446
      %s1448 = vtos %v1447
      %vm1449 = vcmp.eq.s32.totalorder %v157, 2
      %v1450 = vstv %s1448
      %v1451 = vsel %vm1449, %v1450, 0.0
      %v1452 = vadd.f32 %v1118, %v1451
      %v1453 = vld [vmem:[%s1 + $0x540] sm:$0xf]
      %v1454 = vld [vmem:[%s1 + $0x550] sm:$0xff]
      %v1455 = vld [vmem:[%s1 + $0x560] sm:$0xff]
      %v1456 = vld [vmem:[%s1 + $0x570] sm:$0xff]
      %v1457 = vld [vmem:[%s1 + $0x580] sm:$0xff]
      %v1458 = vld [vmem:[%s1 + $0x590] sm:$0xff]
      %v1459 = vld [vmem:[%s1 + $0x5a0] sm:$0xf]
      %v1461 = vsel %vm1351, %v1453, 0
      %1463 = vmatprep.subr.mxu0 0.0
      %1464 = vmatpush1.msra.mxu0 %v1274
      %1465 = vmatprep.subr.mxu0 0.0
      %1466 = vmatpush1.msra.mxu0 0.0
      %1467 = vmatprep.subr.mxu0 0.0
      %1468 = vmatpush1.msra.mxu0 0.0
      %1469 = vmatprep.subr.mxu0 0.0
      %1470 = vmatpush1.msra.mxu0 0.0
      %1471 = vmatprep.subr.mxu0 0.0
      %1472 = vmatpush1.msra.mxu0 0.0
      %1473 = vmatprep.subr.mxu0 0.0
      %1474 = vmatpush1.msra.mxu0 0.0
      %1475 = vmatprep.subr.mxu0 0.0
      %1476 = vmatpush1.msra.mxu0 0.0
      %1477 = vmatprep.subr.mxu0 0.0
      %1478 = vmatpush1.msra.mxu0 0.0
      %1479 = vmatprep.subr.mxu0 0.0
      %1480 = vmatpush1.msra.mxu0 0.0
      %1481 = vmatprep.subr.mxu0 0.0
      %1482 = vmatpush1.msra.mxu0 0.0
      %1483 = vmatprep.subr.mxu0 0.0
      %1484 = vmatpush1.msra.mxu0 0.0
      %1485 = vmatprep.subr.mxu0 0.0
      %1486 = vmatpush1.msra.mxu0 0.0
      %1487 = vmatprep.subr.mxu0 0.0
      %1488 = vmatpush1.msra.mxu0 0.0
      %1489 = vmatprep.subr.mxu0 0.0
      %1490 = vmatpush1.msra.mxu0 0.0
      %1491 = vmatprep.subr.mxu0 0.0
      %1492 = vmatpush1.msra.mxu0 0.0
      %1493 = vmatprep.subr.mxu0 0.0
      %1494 = vmatpush1.msra.mxu0 0.0
      %1495 = vmatprep.subr.mxu0 0.0
      %1496 = vmatpush1.msra.mxu0 0.0
      %1497 = vmatprep.subr.mxu0 0.0
      %1498 = vmatpush1.msra.mxu0 0.0
      %1499 = vmatprep.subr.mxu0 0.0
      %1500 = vmatpush1.msra.mxu0 0.0
      %1501 = vmatprep.subr.mxu0 0.0
      %1502 = vmatpush1.msra.mxu0 0.0
      %1503 = vmatprep.subr.mxu0 0.0
      %1504 = vmatpush1.msra.mxu0 0.0
      %1505 = vmatprep.subr.mxu0 0.0
      %1506 = vmatpush1.msra.mxu0 0.0
      %1507 = vmatprep.subr.mxu0 0.0
      %1508 = vmatpush1.msra.mxu0 0.0
      %1509 = vmatprep.subr.mxu0 0.0
      %1510 = vmatpush1.msra.mxu0 0.0
      %1511 = vmatprep.subr.mxu0 0.0
      %1512 = vmatpush1.msra.mxu0 0.0
      %1513 = vmatprep.subr.mxu0 0.0
      %1514 = vmatpush1.msra.mxu0 0.0
      %1515 = vmatprep.subr.mxu0 0.0
      %1516 = vmatpush1.msra.mxu0 0.0
      %1517 = vmatprep.subr.mxu0 0.0
      %1518 = vmatpush1.msra.mxu0 0.0
      %1519 = vmatprep.subr.mxu0 0.0
      %1520 = vmatpush1.msra.mxu0 0.0
      %1521 = vmatprep.subr.mxu0 0.0
      %1522 = vmatpush1.msra.mxu0 0.0
      %1523 = vmatprep.subr.mxu0 0.0
      %1524 = vmatpush1.msra.mxu0 0.0
      %1525 = vmatprep.subr.mxu0 0.0
      %1526 = vmatpush1.msra.mxu0 0.0
      %1527 = vmatprep.mubr.f32.mxu0 0.0
      %1528 = vmatmul.mubr.f32.gmra.mrb[0].mxu0 %v1461
      %v1529 = vpop.f32.mrb[0].mxu0
      %v1530 = vadd.f32 0.0, %v1529
      %v1531 = vpop.f32.mrb[0].mxu0
      %1532 = vdwg.mxu0
      %v1534 = vsel %vm1277, %v1530, 0
      %1536 = vmatprep.subr.mxu0 0.0
      %1537 = vmatpush1.msra.mxu0 %v1454
      %1538 = vmatprep.subr.mxu0 0.0
      %1539 = vmatpush1.msra.mxu0 %v1455
      %1540 = vmatprep.subr.mxu0 0.0
      %1541 = vmatpush1.msra.mxu0 %v1456
      %1542 = vmatprep.subr.mxu0 0.0
      %1543 = vmatpush1.msra.mxu0 0.0
      %1544 = vmatprep.subr.mxu0 0.0
      %1545 = vmatpush1.msra.mxu0 0.0
      %1546 = vmatprep.subr.mxu0 0.0
      %1547 = vmatpush1.msra.mxu0 0.0
      %1548 = vmatprep.subr.mxu0 0.0
      %1549 = vmatpush1.msra.mxu0 0.0
      %1550 = vmatprep.subr.mxu0 0.0
      %1551 = vmatpush1.msra.mxu0 0.0
      %1552 = vmatprep.subr.mxu0 0.0
      %1553 = vmatpush1.msra.mxu0 0.0
      %1554 = vmatprep.subr.mxu0 0.0
      %1555 = vmatpush1.msra.mxu0 0.0
      %1556 = vmatprep.subr.mxu0 0.0
      %1557 = vmatpush1.msra.mxu0 0.0
      %1558 = vmatprep.subr.mxu0 0.0
      %1559 = vmatpush1.msra.mxu0 0.0
      %1560 = vmatprep.subr.mxu0 0.0
      %1561 = vmatpush1.msra.mxu0 0.0
      %1562 = vmatprep.subr.mxu0 0.0
      %1563 = vmatpush1.msra.mxu0 0.0
      %1564 = vmatprep.subr.mxu0 0.0
      %1565 = vmatpush1.msra.mxu0 0.0
      %1566 = vmatprep.subr.mxu0 0.0
      %1567 = vmatpush1.msra.mxu0 0.0
      %1568 = vmatprep.subr.mxu0 0.0
      %1569 = vmatpush1.msra.mxu0 0.0
      %1570 = vmatprep.subr.mxu0 0.0
      %1571 = vmatpush1.msra.mxu0 0.0
      %1572 = vmatprep.subr.mxu0 0.0
      %1573 = vmatpush1.msra.mxu0 0.0
      %1574 = vmatprep.subr.mxu0 0.0
      %1575 = vmatpush1.msra.mxu0 0.0
      %1576 = vmatprep.subr.mxu0 0.0
      %1577 = vmatpush1.msra.mxu0 0.0
      %1578 = vmatprep.subr.mxu0 0.0
      %1579 = vmatpush1.msra.mxu0 0.0
      %1580 = vmatprep.subr.mxu0 0.0
      %1581 = vmatpush1.msra.mxu0 0.0
      %1582 = vmatprep.subr.mxu0 0.0
      %1583 = vmatpush1.msra.mxu0 0.0
      %1584 = vmatprep.subr.mxu0 0.0
      %1585 = vmatpush1.msra.mxu0 0.0
      %1586 = vmatprep.subr.mxu0 0.0
      %1587 = vmatpush1.msra.mxu0 0.0
      %1588 = vmatprep.subr.mxu0 0.0
      %1589 = vmatpush1.msra.mxu0 0.0
      %1590 = vmatprep.subr.mxu0 0.0
      %1591 = vmatpush1.msra.mxu0 0.0
      %1592 = vmatprep.subr.mxu0 0.0
      %1593 = vmatpush1.msra.mxu0 0.0
      %1594 = vmatprep.subr.mxu0 0.0
      %1595 = vmatpush1.msra.mxu0 0.0
      %1596 = vmatprep.subr.mxu0 0.0
      %1597 = vmatpush1.msra.mxu0 0.0
      %1598 = vmatprep.subr.mxu0 0.0
      %1599 = vmatpush1.msra.mxu0 0.0
      %1600 = vmatprep.mubr.f32.mxu0 0.0
      %1601 = vmatmul.mubr.f32.gmra.mrb[0].mxu0 %v1534
      %v1602 = vpop.f32.mrb[0].mxu0
      %v1603 = vadd.f32 0.0, %v1602
      %v1604 = vpop.f32.mrb[0].mxu0
      %1605 = vdwg.mxu0
      %vm1606 = vcmask 97280
      %v1608 = vsel %vm1606, %v1603, 0
      %vm1610 = vcmask 1043456
      %v1612 = vsel %vm1610, %v1459, 0
      %1614 = vmatprep.subr.mxu0 0.0
      %1615 = vmatpush1.msra.mxu0 %v1458
      %1616 = vmatprep.subr.mxu0 0.0
      %1617 = vmatpush1.msra.mxu0 %v1612
      %1618 = vmatprep.subr.mxu0 0.0
      %1619 = vmatpush1.msra.mxu0 0.0
      %1620 = vmatprep.subr.mxu0 0.0
      %1621 = vmatpush1.msra.mxu0 0.0
      %1622 = vmatprep.subr.mxu0 0.0
      %1623 = vmatpush1.msra.mxu0 0.0
      %1624 = vmatprep.subr.mxu0 0.0
      %1625 = vmatpush1.msra.mxu0 0.0
      %1626 = vmatprep.subr.mxu0 0.0
      %1627 = vmatpush1.msra.mxu0 0.0
      %1628 = vmatprep.subr.mxu0 0.0
      %1629 = vmatpush1.msra.mxu0 0.0
      %1630 = vmatprep.subr.mxu0 0.0
      %1631 = vmatpush1.msra.mxu0 0.0
      %1632 = vmatprep.subr.mxu0 0.0
      %1633 = vmatpush1.msra.mxu0 0.0
      %1634 = vmatprep.subr.mxu0 0.0
      %1635 = vmatpush1.msra.mxu0 0.0
      %1636 = vmatprep.subr.mxu0 0.0
      %1637 = vmatpush1.msra.mxu0 0.0
      %1638 = vmatprep.subr.mxu0 0.0
      %1639 = vmatpush1.msra.mxu0 0.0
      %1640 = vmatprep.subr.mxu0 0.0
      %1641 = vmatpush1.msra.mxu0 0.0
      %1642 = vmatprep.subr.mxu0 0.0
      %1643 = vmatpush1.msra.mxu0 0.0
      %1644 = vmatprep.subr.mxu0 0.0
      %1645 = vmatpush1.msra.mxu0 0.0
      %1646 = vmatprep.subr.mxu0 0.0
      %1647 = vmatpush1.msra.mxu0 0.0
      %1648 = vmatprep.subr.mxu0 0.0
      %1649 = vmatpush1.msra.mxu0 0.0
      %1650 = vmatprep.subr.mxu0 0.0
      %1651 = vmatpush1.msra.mxu0 0.0
      %1652 = vmatprep.subr.mxu0 0.0
      %1653 = vmatpush1.msra.mxu0 0.0
      %1654 = vmatprep.subr.mxu0 0.0
      %1655 = vmatpush1.msra.mxu0 0.0
      %1656 = vmatprep.subr.mxu0 0.0
      %1657 = vmatpush1.msra.mxu0 0.0
      %1658 = vmatprep.subr.mxu0 0.0
      %1659 = vmatpush1.msra.mxu0 0.0
      %1660 = vmatprep.subr.mxu0 0.0
      %1661 = vmatpush1.msra.mxu0 0.0
      %1662 = vmatprep.subr.mxu0 0.0
      %1663 = vmatpush1.msra.mxu0 0.0
      %1664 = vmatprep.subr.mxu0 0.0
      %1665 = vmatpush1.msra.mxu0 0.0
      %1666 = vmatprep.subr.mxu0 0.0
      %1667 = vmatpush1.msra.mxu0 0.0
      %1668 = vmatprep.subr.mxu0 0.0
      %1669 = vmatpush1.msra.mxu0 0.0
      %1670 = vmatprep.subr.mxu0 0.0
      %1671 = vmatpush1.msra.mxu0 0.0
      %1672 = vmatprep.subr.mxu0 0.0
      %1673 = vmatpush1.msra.mxu0 0.0
      %1674 = vmatprep.subr.mxu0 0.0
      %1675 = vmatpush1.msra.mxu0 0.0
      %1676 = vmatprep.subr.mxu0 0.0
      %1677 = vmatpush1.msra.mxu0 0.0
      %1678 = vmatprep.mubr.f32.mxu0 0.0
      %1679 = vmatmul.mubr.f32.gmra.mrb[0].mxu0 %v1608
      %v1680 = vpop.f32.mrb[0].mxu0
      %v1681 = vadd.f32 0.0, %v1680
      %v1682 = vpop.f32.mrb[0].mxu0
      %1683 = vdwg.mxu0
      %vm1684 = vcmask 31744
      %v1686 = vsel %vm1684, %v1457, 0
      %v1689 = vsel %vm1610, %v1681, 0
      %1691 = vmatprep.subr.mxu0 0.0
      %1692 = vmatpush1.msra.mxu0 %v1689
      %1693 = vmatprep.subr.mxu0 0.0
      %1694 = vmatpush1.msra.mxu0 0.0
      %1695 = vmatprep.subr.mxu0 0.0
      %1696 = vmatpush1.msra.mxu0 0.0
      %1697 = vmatprep.subr.mxu0 0.0
      %1698 = vmatpush1.msra.mxu0 0.0
      %1699 = vmatprep.subr.mxu0 0.0
      %1700 = vmatpush1.msra.mxu0 0.0
      %1701 = vmatprep.subr.mxu0 0.0
      %1702 = vmatpush1.msra.mxu0 0.0
      %1703 = vmatprep.subr.mxu0 0.0
      %1704 = vmatpush1.msra.mxu0 0.0
      %1705 = vmatprep.subr.mxu0 0.0
      %1706 = vmatpush1.msra.mxu0 0.0
      %1707 = vmatprep.subr.mxu0 0.0
      %1708 = vmatpush1.msra.mxu0 0.0
      %1709 = vmatprep.subr.mxu0 0.0
      %1710 = vmatpush1.msra.mxu0 0.0
      %1711 = vmatprep.subr.mxu0 0.0
      %1712 = vmatpush1.msra.mxu0 0.0
      %1713 = vmatprep.subr.mxu0 0.0
      %1714 = vmatpush1.msra.mxu0 0.0
      %1715 = vmatprep.subr.mxu0 0.0
      %1716 = vmatpush1.msra.mxu0 0.0
      %1717 = vmatprep.subr.mxu0 0.0
      %1718 = vmatpush1.msra.mxu0 0.0
      %1719 = vmatprep.subr.mxu0 0.0
      %1720 = vmatpush1.msra.mxu0 0.0
      %1721 = vmatprep.subr.mxu0 0.0
      %1722 = vmatpush1.msra.mxu0 0.0
      %1723 = vmatprep.subr.mxu0 0.0
      %1724 = vmatpush1.msra.mxu0 0.0
      %1725 = vmatprep.subr.mxu0 0.0
      %1726 = vmatpush1.msra.mxu0 0.0
      %1727 = vmatprep.subr.mxu0 0.0
      %1728 = vmatpush1.msra.mxu0 0.0
      %1729 = vmatprep.subr.mxu0 0.0
      %1730 = vmatpush1.msra.mxu0 0.0
      %1731 = vmatprep.subr.mxu0 0.0
      %1732 = vmatpush1.msra.mxu0 0.0
      %1733 = vmatprep.subr.mxu0 0.0
      %1734 = vmatpush1.msra.mxu0 0.0
      %1735 = vmatprep.subr.mxu0 0.0
      %1736 = vmatpush1.msra.mxu0 0.0
      %1737 = vmatprep.subr.mxu0 0.0
      %1738 = vmatpush1.msra.mxu0 0.0
      %1739 = vmatprep.subr.mxu0 0.0
      %1740 = vmatpush1.msra.mxu0 0.0
      %1741 = vmatprep.subr.mxu0 0.0
      %1742 = vmatpush1.msra.mxu0 0.0
      %1743 = vmatprep.subr.mxu0 0.0
      %1744 = vmatpush1.msra.mxu0 0.0
      %1745 = vmatprep.subr.mxu0 0.0
      %1746 = vmatpush1.msra.mxu0 0.0
      %1747 = vmatprep.subr.mxu0 0.0
      %1748 = vmatpush1.msra.mxu0 0.0
      %1749 = vmatprep.subr.mxu0 0.0
      %1750 = vmatpush1.msra.mxu0 0.0
      %1751 = vmatprep.subr.mxu0 0.0
      %1752 = vmatpush1.msra.mxu0 0.0
      %1753 = vmatprep.subr.mxu0 0.0
      %1754 = vmatpush1.msra.mxu0 0.0
      %1755 = vmatprep.mubr.f32.mxu0 0.0
      %1756 = vmatmul.mubr.f32.gmra.mrb[0].mxu0 %v1686
      %v1757 = vpop.f32.mrb[0].mxu0
      %v1758 = vadd.f32 0.0, %v1757
      %v1759 = vpop.f32.mrb[0].mxu0
      %1760 = vdwg.mxu0
      %v1761 = vsub.f32 %v1274, %v1758
      %v1762 = vand.u32 2147483647, %v1761
      %v1763 = vsel %vm1277, %v1762, 0.0
      %1764 = vadd.xlane.f32.xlu0 %v1763
      %v1765 = vpop.xlane.xlu0 %1764
      %v1766 = vrot.slane %v1765, 4
      %v1767 = vadd.f32 %v1765, %v1766
      %v1768 = vrot.slane %v1767, 2
      %v1769 = vadd.f32 %v1767, %v1768
      %v1770 = vrot.slane %v1769, 1
      %v1771 = vadd.f32 %v1769, %v1770
      %s1772 = vtos %v1771
      %vm1773 = vcmp.eq.s32.totalorder %v157, 3
      %v1774 = vstv %s1772
      %v1775 = vsel %vm1773, %v1774, 0.0
      %v1776 = vadd.f32 %v1452, %v1775
      %v1777 = vld [vmem:[%s1 + $0x5b0] sm:$0x3]
      %v1778 = vld [vmem:[%s1 + $0x5c0] sm:$0xff]
      %v1779 = vld [vmem:[%s1 + $0x5d0] sm:$0xf]
      %v1780 = vld [vmem:[%s1 + $0x5e0] sm:$0xf]
      %v1781 = vld [vmem:[%s1 + $0x5f0] sm:$0x3f]
      %v1783 = vsel %vm1684, %v1777, 0
      %v1785 = vsel %vm1610, %v1603, 0
      %1787 = vmatprep.subr.mxu0 0.0
      %1788 = vmatpush1.msra.mxu0 %v1785
      %1789 = vmatprep.subr.mxu0 0.0
      %1790 = vmatpush1.msra.mxu0 0.0
      %1791 = vmatprep.subr.mxu0 0.0
      %1792 = vmatpush1.msra.mxu0 0.0
      %1793 = vmatprep.subr.mxu0 0.0
      %1794 = vmatpush1.msra.mxu0 0.0
      %1795 = vmatprep.subr.mxu0 0.0
      %1796 = vmatpush1.msra.mxu0 0.0
      %1797 = vmatprep.subr.mxu0 0.0
      %1798 = vmatpush1.msra.mxu0 0.0
      %1799 = vmatprep.subr.mxu0 0.0
      %1800 = vmatpush1.msra.mxu0 0.0
      %1801 = vmatprep.subr.mxu0 0.0
      %1802 = vmatpush1.msra.mxu0 0.0
      %1803 = vmatprep.subr.mxu0 0.0
      %1804 = vmatpush1.msra.mxu0 0.0
      %1805 = vmatprep.subr.mxu0 0.0
      %1806 = vmatpush1.msra.mxu0 0.0
      %1807 = vmatprep.subr.mxu0 0.0
      %1808 = vmatpush1.msra.mxu0 0.0
      %1809 = vmatprep.subr.mxu0 0.0
      %1810 = vmatpush1.msra.mxu0 0.0
      %1811 = vmatprep.subr.mxu0 0.0
      %1812 = vmatpush1.msra.mxu0 0.0
      %1813 = vmatprep.subr.mxu0 0.0
      %1814 = vmatpush1.msra.mxu0 0.0
      %1815 = vmatprep.subr.mxu0 0.0
      %1816 = vmatpush1.msra.mxu0 0.0
      %1817 = vmatprep.subr.mxu0 0.0
      %1818 = vmatpush1.msra.mxu0 0.0
      %1819 = vmatprep.subr.mxu0 0.0
      %1820 = vmatpush1.msra.mxu0 0.0
      %1821 = vmatprep.subr.mxu0 0.0
      %1822 = vmatpush1.msra.mxu0 0.0
      %1823 = vmatprep.subr.mxu0 0.0
      %1824 = vmatpush1.msra.mxu0 0.0
      %1825 = vmatprep.subr.mxu0 0.0
      %1826 = vmatpush1.msra.mxu0 0.0
      %1827 = vmatprep.subr.mxu0 0.0
      %1828 = vmatpush1.msra.mxu0 0.0
      %1829 = vmatprep.subr.mxu0 0.0
      %1830 = vmatpush1.msra.mxu0 0.0
      %1831 = vmatprep.subr.mxu0 0.0
      %1832 = vmatpush1.msra.mxu0 0.0
      %1833 = vmatprep.subr.mxu0 0.0
      %1834 = vmatpush1.msra.mxu0 0.0
      %1835 = vmatprep.subr.mxu0 0.0
      %1836 = vmatpush1.msra.mxu0 0.0
      %1837 = vmatprep.subr.mxu0 0.0
      %1838 = vmatpush1.msra.mxu0 0.0
      %1839 = vmatprep.subr.mxu0 0.0
      %1840 = vmatpush1.msra.mxu0 0.0
      %1841 = vmatprep.subr.mxu0 0.0
      %1842 = vmatpush1.msra.mxu0 0.0
      %1843 = vmatprep.subr.mxu0 0.0
      %1844 = vmatpush1.msra.mxu0 0.0
      %1845 = vmatprep.subr.mxu0 0.0
      %1846 = vmatpush1.msra.mxu0 0.0
      %1847 = vmatprep.subr.mxu0 0.0
      %1848 = vmatpush1.msra.mxu0 0.0
      %1849 = vmatprep.subr.mxu0 0.0
      %1850 = vmatpush1.msra.mxu0 0.0
      %1851 = vmatprep.mubr.f32.mxu0 0.0
      %1852 = vmatmul.mubr.f32.gmra.mrb[0].mxu0 %v1783
      %v1853 = vpop.f32.mrb[0].mxu0
      %v1854 = vadd.f32 0.0, %v1853
      %v1855 = vpop.f32.mrb[0].mxu0
      %1856 = vdwg.mxu0
      %v1858 = vsel %vm1606, %v1854, 0
      %v1861 = vsel %vm1610, %v1779, 0
      %1863 = vmatprep.subr.mxu0 0.0
      %1864 = vmatpush1.msra.mxu0 %v1778
      %1865 = vmatprep.subr.mxu0 0.0
      %1866 = vmatpush1.msra.mxu0 %v1861
      %1867 = vmatprep.subr.mxu0 0.0
      %1868 = vmatpush1.msra.mxu0 0.0
      %1869 = vmatprep.subr.mxu0 0.0
      %1870 = vmatpush1.msra.mxu0 0.0
      %1871 = vmatprep.subr.mxu0 0.0
      %1872 = vmatpush1.msra.mxu0 0.0
      %1873 = vmatprep.subr.mxu0 0.0
      %1874 = vmatpush1.msra.mxu0 0.0
      %1875 = vmatprep.subr.mxu0 0.0
      %1876 = vmatpush1.msra.mxu0 0.0
      %1877 = vmatprep.subr.mxu0 0.0
      %1878 = vmatpush1.msra.mxu0 0.0
      %1879 = vmatprep.subr.mxu0 0.0
      %1880 = vmatpush1.msra.mxu0 0.0
      %1881 = vmatprep.subr.mxu0 0.0
      %1882 = vmatpush1.msra.mxu0 0.0
      %1883 = vmatprep.subr.mxu0 0.0
      %1884 = vmatpush1.msra.mxu0 0.0
      %1885 = vmatprep.subr.mxu0 0.0
      %1886 = vmatpush1.msra.mxu0 0.0
      %1887 = vmatprep.subr.mxu0 0.0
      %1888 = vmatpush1.msra.mxu0 0.0
      %1889 = vmatprep.subr.mxu0 0.0
      %1890 = vmatpush1.msra.mxu0 0.0
      %1891 = vmatprep.subr.mxu0 0.0
      %1892 = vmatpush1.msra.mxu0 0.0
      %1893 = vmatprep.subr.mxu0 0.0
      %1894 = vmatpush1.msra.mxu0 0.0
      %1895 = vmatprep.subr.mxu0 0.0
      %1896 = vmatpush1.msra.mxu0 0.0
      %1897 = vmatprep.subr.mxu0 0.0
      %1898 = vmatpush1.msra.mxu0 0.0
      %1899 = vmatprep.subr.mxu0 0.0
      %1900 = vmatpush1.msra.mxu0 0.0
      %1901 = vmatprep.subr.mxu0 0.0
      %1902 = vmatpush1.msra.mxu0 0.0
      %1903 = vmatprep.subr.mxu0 0.0
      %1904 = vmatpush1.msra.mxu0 0.0
      %1905 = vmatprep.subr.mxu0 0.0
      %1906 = vmatpush1.msra.mxu0 0.0
      %1907 = vmatprep.subr.mxu0 0.0
      %1908 = vmatpush1.msra.mxu0 0.0
      %1909 = vmatprep.subr.mxu0 0.0
      %1910 = vmatpush1.msra.mxu0 0.0
      %1911 = vmatprep.subr.mxu0 0.0
      %1912 = vmatpush1.msra.mxu0 0.0
      %1913 = vmatprep.subr.mxu0 0.0
      %1914 = vmatpush1.msra.mxu0 0.0
      %1915 = vmatprep.subr.mxu0 0.0
      %1916 = vmatpush1.msra.mxu0 0.0
      %1917 = vmatprep.subr.mxu0 0.0
      %1918 = vmatpush1.msra.mxu0 0.0
      %1919 = vmatprep.subr.mxu0 0.0
      %1920 = vmatpush1.msra.mxu0 0.0
      %1921 = vmatprep.subr.mxu0 0.0
      %1922 = vmatpush1.msra.mxu0 0.0
      %1923 = vmatprep.subr.mxu0 0.0
      %1924 = vmatpush1.msra.mxu0 0.0
      %1925 = vmatprep.subr.mxu0 0.0
      %1926 = vmatpush1.msra.mxu0 0.0
      %1927 = vmatprep.mubr.f32.mxu0 0.0
      %1928 = vmatmul.mubr.f32.gmra.mrb[0].mxu0 %v1858
      %v1929 = vpop.f32.mrb[0].mxu0
      %v1930 = vadd.f32 0.0, %v1929
      %v1931 = vpop.f32.mrb[0].mxu0
      %1932 = vdwg.mxu0
      %vm1933 = vcmask 48128
      %v1935 = vsel %vm1933, %v1930, 0
      %vm1937 = vcmask 1045504
      %v1939 = vsel %vm1937, %v1781, 0
      %1941 = vmatprep.subr.mxu0 0.0
      %1942 = vmatpush1.msra.mxu0 %v1939
      %1943 = vmatprep.subr.mxu0 0.0
      %1944 = vmatpush1.msra.mxu0 0.0
      %1945 = vmatprep.subr.mxu0 0.0
      %1946 = vmatpush1.msra.mxu0 0.0
      %1947 = vmatprep.subr.mxu0 0.0
      %1948 = vmatpush1.msra.mxu0 0.0
      %1949 = vmatprep.subr.mxu0 0.0
      %1950 = vmatpush1.msra.mxu0 0.0
      %1951 = vmatprep.subr.mxu0 0.0
      %1952 = vmatpush1.msra.mxu0 0.0
      %1953 = vmatprep.subr.mxu0 0.0
      %1954 = vmatpush1.msra.mxu0 0.0
      %1955 = vmatprep.subr.mxu0 0.0
      %1956 = vmatpush1.msra.mxu0 0.0
      %1957 = vmatprep.subr.mxu0 0.0
      %1958 = vmatpush1.msra.mxu0 0.0
      %1959 = vmatprep.subr.mxu0 0.0
      %1960 = vmatpush1.msra.mxu0 0.0
      %1961 = vmatprep.subr.mxu0 0.0
      %1962 = vmatpush1.msra.mxu0 0.0
      %1963 = vmatprep.subr.mxu0 0.0
      %1964 = vmatpush1.msra.mxu0 0.0
      %1965 = vmatprep.subr.mxu0 0.0
      %1966 = vmatpush1.msra.mxu0 0.0
      %1967 = vmatprep.subr.mxu0 0.0
      %1968 = vmatpush1.msra.mxu0 0.0
      %1969 = vmatprep.subr.mxu0 0.0
      %1970 = vmatpush1.msra.mxu0 0.0
      %1971 = vmatprep.subr.mxu0 0.0
      %1972 = vmatpush1.msra.mxu0 0.0
      %1973 = vmatprep.subr.mxu0 0.0
      %1974 = vmatpush1.msra.mxu0 0.0
      %1975 = vmatprep.subr.mxu0 0.0
      %1976 = vmatpush1.msra.mxu0 0.0
      %1977 = vmatprep.subr.mxu0 0.0
      %1978 = vmatpush1.msra.mxu0 0.0
      %1979 = vmatprep.subr.mxu0 0.0
      %1980 = vmatpush1.msra.mxu0 0.0
      %1981 = vmatprep.subr.mxu0 0.0
      %1982 = vmatpush1.msra.mxu0 0.0
      %1983 = vmatprep.subr.mxu0 0.0
      %1984 = vmatpush1.msra.mxu0 0.0
      %1985 = vmatprep.subr.mxu0 0.0
      %1986 = vmatpush1.msra.mxu0 0.0
      %1987 = vmatprep.subr.mxu0 0.0
      %1988 = vmatpush1.msra.mxu0 0.0
      %1989 = vmatprep.subr.mxu0 0.0
      %1990 = vmatpush1.msra.mxu0 0.0
      %1991 = vmatprep.subr.mxu0 0.0
      %1992 = vmatpush1.msra.mxu0 0.0
      %1993 = vmatprep.subr.mxu0 0.0
      %1994 = vmatpush1.msra.mxu0 0.0
      %1995 = vmatprep.subr.mxu0 0.0
      %1996 = vmatpush1.msra.mxu0 0.0
      %1997 = vmatprep.subr.mxu0 0.0
      %1998 = vmatpush1.msra.mxu0 0.0
      %1999 = vmatprep.subr.mxu0 0.0
      %2000 = vmatpush1.msra.mxu0 0.0
      %2001 = vmatprep.subr.mxu0 0.0
      %2002 = vmatpush1.msra.mxu0 0.0
      %2003 = vmatprep.subr.mxu0 0.0
      %2004 = vmatpush1.msra.mxu0 0.0
      %2005 = vmatprep.mubr.f32.mxu0 0.0
      %2006 = vmatmul.mubr.f32.gmra.mrb[0].mxu0 %v1935
      %v2007 = vpop.f32.mrb[0].mxu0
      %v2008 = vadd.f32 0.0, %v2007
      %v2009 = vpop.f32.mrb[0].mxu0
      %2010 = vdwg.mxu0
      %vm2011 = vcmask 15360
      %v2013 = vsel %vm2011, %v1780, 0
      %vm2015 = vcmask 1041408
      %v2017 = vsel %vm2015, %v2008, 0
      %2019 = vmatprep.subr.mxu0 0.0
      %2020 = vmatpush1.msra.mxu0 %v2017
      %2021 = vmatprep.subr.mxu0 0.0
      %2022 = vmatpush1.msra.mxu0 0.0
      %2023 = vmatprep.subr.mxu0 0.0
      %2024 = vmatpush1.msra.mxu0 0.0
      %2025 = vmatprep.subr.mxu0 0.0
      %2026 = vmatpush1.msra.mxu0 0.0
      %2027 = vmatprep.subr.mxu0 0.0
      %2028 = vmatpush1.msra.mxu0 0.0
      %2029 = vmatprep.subr.mxu0 0.0
      %2030 = vmatpush1.msra.mxu0 0.0
      %2031 = vmatprep.subr.mxu0 0.0
      %2032 = vmatpush1.msra.mxu0 0.0
      %2033 = vmatprep.subr.mxu0 0.0
      %2034 = vmatpush1.msra.mxu0 0.0
      %2035 = vmatprep.subr.mxu0 0.0
      %2036 = vmatpush1.msra.mxu0 0.0
      %2037 = vmatprep.subr.mxu0 0.0
      %2038 = vmatpush1.msra.mxu0 0.0
      %2039 = vmatprep.subr.mxu0 0.0
      %2040 = vmatpush1.msra.mxu0 0.0
      %2041 = vmatprep.subr.mxu0 0.0
      %2042 = vmatpush1.msra.mxu0 0.0
      %2043 = vmatprep.subr.mxu0 0.0
      %2044 = vmatpush1.msra.mxu0 0.0
      %2045 = vmatprep.subr.mxu0 0.0
      %2046 = vmatpush1.msra.mxu0 0.0
      %2047 = vmatprep.subr.mxu0 0.0
      %2048 = vmatpush1.msra.mxu0 0.0
      %2049 = vmatprep.subr.mxu0 0.0
      %2050 = vmatpush1.msra.mxu0 0.0
      %2051 = vmatprep.subr.mxu0 0.0
      %2052 = vmatpush1.msra.mxu0 0.0
      %2053 = vmatprep.subr.mxu0 0.0
      %2054 = vmatpush1.msra.mxu0 0.0
      %2055 = vmatprep.subr.mxu0 0.0
      %2056 = vmatpush1.msra.mxu0 0.0
      %2057 = vmatprep.subr.mxu0 0.0
      %2058 = vmatpush1.msra.mxu0 0.0
      %2059 = vmatprep.subr.mxu0 0.0
      %2060 = vmatpush1.msra.mxu0 0.0
      %2061 = vmatprep.subr.mxu0 0.0
      %2062 = vmatpush1.msra.mxu0 0.0
      %2063 = vmatprep.subr.mxu0 0.0
      %2064 = vmatpush1.msra.mxu0 0.0
      %2065 = vmatprep.subr.mxu0 0.0
      %2066 = vmatpush1.msra.mxu0 0.0
      %2067 = vmatprep.subr.mxu0 0.0
      %2068 = vmatpush1.msra.mxu0 0.0
      %2069 = vmatprep.subr.mxu0 0.0
      %2070 = vmatpush1.msra.mxu0 0.0
      %2071 = vmatprep.subr.mxu0 0.0
      %2072 = vmatpush1.msra.mxu0 0.0
      %2073 = vmatprep.subr.mxu0 0.0
      %2074 = vmatpush1.msra.mxu0 0.0
      %2075 = vmatprep.subr.mxu0 0.0
      %2076 = vmatpush1.msra.mxu0 0.0
      %2077 = vmatprep.subr.mxu0 0.0
      %2078 = vmatpush1.msra.mxu0 0.0
      %2079 = vmatprep.subr.mxu0 0.0
      %2080 = vmatpush1.msra.mxu0 0.0
      %2081 = vmatprep.subr.mxu0 0.0
      %2082 = vmatpush1.msra.mxu0 0.0
      %2083 = vmatprep.mubr.f32.mxu0 0.0
      %2084 = vmatmul.mubr.f32.gmra.mrb[0].mxu0 %v2013
      %v2085 = vpop.f32.mrb[0].mxu0
      %v2086 = vadd.f32 0.0, %v2085
      %v2087 = vpop.f32.mrb[0].mxu0
      %2088 = vdwg.mxu0
      %v2089 = vsub.f32 %v1603, %v2086
      %v2090 = vand.u32 2147483647, %v2089
      %vm2091 = vcmask 93184
      %v2092 = vsel %vm2091, %v2090, 0.0
      %2093 = vadd.xlane.f32.xlu0 %v2092
      %v2094 = vpop.xlane.xlu0 %2093
      %v2095 = vrot.slane %v2094, 4
      %v2096 = vadd.f32 %v2094, %v2095
      %v2097 = vrot.slane %v2096, 2
      %v2098 = vadd.f32 %v2096, %v2097
      %v2099 = vrot.slane %v2098, 1
      %v2100 = vadd.f32 %v2098, %v2099
      %s2101 = vtos %v2100
      %vm2102 = vcmp.eq.s32.totalorder %v157, 4
      %v2103 = vstv %s2101
      %v2104 = vsel %vm2102, %v2103, 0.0
      %v2105 = vadd.f32 %v1776, %v2104
      %2106 = vst [vmem:[%s139] sm:$0x1] %v2105
      %p2107 = scmp.lt.s32.totalorder %s13, 1
      %s2108 = scalar_select %p2107, %s13, 1
      %s2109 = scalar_lea.vmem %s2, %s2108
      // Predicated region
      $region29: #{total_loss.1} parent=27 // pred_check
        %p2110 = pneg %p78
      $region30: #{total_loss.1} parent=27 // pred_check_branch
        %2112 = sbr.rel (%p2110) target = $region32
      $region31: #{total_loss.1} parent=27 // pred_region
        _
      $region32: #{total_loss.1} parent=27 // pred_fallthru
        _
    $region28: #{total_loss.1} parent=5 // pred_fallthru
      _
    %p2113 = scmp.le.s32.totalorder 2, %s8
    // Predicated region
    $region33: #{total_loss.1} parent=5 // pred_check
      %p2114 = pneg %p2113
    $region34: #{total_loss.1} parent=5 // pred_check_branch
      %2116 = sbr.rel (%p2114) target = $region36
    $region35: #{total_loss.1} parent=5 // pred_region
      %s2117 = ssub.s32 %s8, 2
      // Predicated region
      $region37: #{total_loss.1} parent=35 // pred_check
        %p2118 = pneg %p84
      $region38: #{total_loss.1} parent=35 // pred_check_branch
        %2120 = sbr.rel (%p2118) target = $region40
      $region39: #{total_loss.1} parent=35 // pred_region
        %p2121 = scmp.lt.s32.totalorder %s14, 1
        %s2122 = scalar_select %p2121, %s14, 1
        %s2123 = scalar_lea.vmem %s2, %s2122
      $region40: #{total_loss.1} parent=35 // pred_fallthru
        _
    $region36: #{total_loss.1} parent=5 // pred_fallthru
      _
  $region6: #{total_loss.1} parent=0 // loop_footer
    %s12 = sadd.s32 1, %s8
  $region7: #{total_loss.1} parent=0 // loop_footer_branch
    %7 = sbr.rel target = $region3
  $region8: #{total_loss.1} parent=0 // loop_exit
    _

</llo_original>
